<compile_context>
chip_gen: v7x
topology: tpu7x:2x2x1
jax: 0.10.0
libtpu: 0.0.40
codegen_flags: <defaults>
</compile_context>

<pallas_src>
import functools

import numpy as np
import jax
import jax.numpy as jnp
from jax import lax
from jax.experimental import pallas as pl
from jax.experimental.pallas import tpu as pltpu


# ---------------------------------------------------------------------------
# Helpers
# ---------------------------------------------------------------------------
def _const_spec(shape):
    """Full-array spec with a constant index map (weights stay resident across
    the whole grid).  Single-buffer it when the installed Pallas exposes
    pipeline_mode: constant blocks gain nothing from double buffering and v7x
    has only 64 MiB of VMEM."""
    index_map = lambda *_: (0,) * len(shape)
    try:
        return pl.BlockSpec(shape, index_map, pipeline_mode=pl.Buffered(1))
    except Exception:  # older/newer API without pipeline_mode -> default spec
        return pl.BlockSpec(shape, index_map)


def _pick_batch_tile(B, N):
    """Pick the batch tile Bt: (a) divides B, (b) keeps the projection matmul
    M-dim (Bt*N) within ~512 rows, (c) prefers an even number of grid steps so
    both v7x TensorCores get work under dimension_semantics='parallel'."""
    divisors = [d for d in range(1, B + 1) if B % d == 0]
    ok_rows = lambda d: d == 1 or d * N <= 512
    even = [d for d in divisors if (B // d) % 2 == 0 and ok_rows(d)]
    cands = even if even else [d for d in divisors if ok_rows(d)]
    return max(cands)


def _vmem_bytes_estimate(bt, n, c, h):
    """Rough per-step VMEM need (weights, double-buffered I/O, intermediates)."""
    rows = bt * n
    weights = 2 * (c * 3 * c + 3 * c + c * c + c)          # bf16 weights + biases
    io = 2 * rows * c * (4 + 4)                            # x / out tiles (dbl buf)
    interm = (rows * 3 * c * 4 +                           # f32 qkv accumulator
              3 * rows * c * 2 +                           # bf16 q, k, v
              bt * h * n * n * 6 +                         # f32 scores + bf16 probs
              rows * c * 6)                                # attention out (f32+bf16)
    return 2 * weights + io + 2 * interm


# ---------------------------------------------------------------------------
# Fused kernel: qkv projection + all-heads attention + output projection
# ---------------------------------------------------------------------------
def _fused_mha_kernel(x_ref, wqkv_ref, bqkv_ref, wp_ref, bp_ref, o_ref, *,
                      num_heads):
    bt, n_tok, c = x_ref.shape
    h = num_heads
    d = c // h
    rows = bt * n_tok
    cdt = wqkv_ref.dtype                       # bf16 compute dtype for MXU inputs

    # (Bt, N, C) -> (Bt*N, C): leading-dim merge, lane width unchanged (free).
    x = x_ref[...].reshape(rows, c).astype(cdt)

    # ONE wide qkv projection on the MXU (bf16 in, f32 accumulate).
    # sqrt(embed_dim) is pre-folded into the q columns of w_qkv / b_qkv.
    qkv = jnp.dot(x, wqkv_ref[...], preferred_element_type=jnp.float32)
    qkv = qkv + bqkv_ref[...]

    # PyTorch's quirky head split: per batch element, the row-major (N, C)
    # buffer is reinterpreted as (H, N, D).  Mixes rows with columns of the
    # projection output, so it cannot be hoisted into the wrapper/weights.
    def split_heads(t):
        return t.reshape(bt * h, n_tok, d).astype(cdt)

    q = split_heads(qkv[:, 0 * c:1 * c])
    k = split_heads(qkv[:, 1 * c:2 * c])
    v = split_heads(qkv[:, 2 * c:3 * c])

    # Scores + softmax in f32, batched over (Bt*H).  Contraction depth is only
    # D, so these are small MXU tiles; the wide projections above dominate.
    s = lax.dot_general(q, k, dimension_numbers=(((2,), (2,)), ((0,), (0,))),
                        preferred_element_type=jnp.float32)       # (Bt*H, N, N)
    s = s - jnp.max(s, axis=-1, keepdims=True)
    p = jnp.exp(s)
    p = p * pl.reciprocal(jnp.sum(p, axis=-1, keepdims=True), approx=True)
    # TODO(synk): attention dropout omitted (attn_drop_ratio = 0.0 / eval).

    o = lax.dot_general(p.astype(cdt), v,
                        dimension_numbers=(((2,), (1,)), ((0,), (0,))),
                        preferred_element_type=jnp.float32)       # (Bt*H, N, D)

    # Raw merge back: (Bt*H, N, D) flat == (Bt*N, C) flat (PyTorch reshape).
    o = o.reshape(rows, c).astype(cdt)

    out = jnp.dot(o, wp_ref[...], preferred_element_type=jnp.float32) + bp_ref[...]
    o_ref[...] = out.reshape(bt, n_tok, c).astype(o_ref.dtype)


def mha_fused(x, p, *, num_heads, block_b=None):
    B, N, C = x.shape
    assert C % num_heads == 0
    Bt = block_b if block_b is not None else _pick_batch_tile(B, N)
    assert B % Bt == 0
    vmem_limit = int(max(32 * 1024 * 1024,
                         2 * _vmem_bytes_estimate(Bt, N, C, num_heads)))
    return pl.pallas_call(
        functools.partial(_fused_mha_kernel, num_heads=num_heads),
        out_shape=jax.ShapeDtypeStruct((B, N, C), x.dtype),
        grid=(B // Bt,),
        in_specs=[
            pl.BlockSpec((Bt, N, C), lambda i: (i, 0, 0)),
            _const_spec((C, 3 * C)),      # fused w_qkv (scale folded into q cols)
            _const_spec((1, 3 * C)),      # fused b_qkv
            _const_spec((C, C)),          # w_proj
            _const_spec((1, C)),          # b_proj
        ],
        out_specs=pl.BlockSpec((Bt, N, C), lambda i: (i, 0, 0)),
        compiler_params=pltpu.CompilerParams(
            dimension_semantics=("parallel",),
            vmem_limit_bytes=vmem_limit),
    )(x, p["w_qkv"], p["b_qkv"], p["w_proj"], p["b_proj"])


# ---------------------------------------------------------------------------
# Fallback pipeline (always lowers): tiled linear + all-heads attention core
# ---------------------------------------------------------------------------
def _linear_kernel(x_ref, w_ref, b_ref, o_ref):
    acc = jnp.dot(x_ref[...].astype(w_ref.dtype), w_ref[...],
                  preferred_element_type=jnp.float32) + b_ref[...]
    o_ref[...] = acc.astype(o_ref.dtype)


def _pallas_linear(x2d, w, b2d, out_dtype):
    M, K = x2d.shape
    Nout = w.shape[1]
    tm = next((t for t in (512, 256, 128) if M % t == 0), M)
    return pl.pallas_call(
        _linear_kernel,
        out_shape=jax.ShapeDtypeStruct((M, Nout), out_dtype),
        grid=(M // tm,),
        in_specs=[pl.BlockSpec((tm, K), lambda i: (i, 0)),
                  _const_spec((K, Nout)),
                  _const_spec((1, Nout))],
        out_specs=pl.BlockSpec((tm, Nout), lambda i: (i, 0)),
        compiler_params=pltpu.CompilerParams(dimension_semantics=("parallel",)),
    )(x2d, w, b2d)


def _attn_kernel(q_ref, k_ref, v_ref, o_ref):
    q, k, v = q_ref[0], k_ref[0], v_ref[0]                         # (H, N, D)
    s = lax.dot_general(q, k, dimension_numbers=(((2,), (2,)), ((0,), (0,))),
                        preferred_element_type=jnp.float32)        # (H, N, N)
    s = s - jnp.max(s, axis=-1, keepdims=True)
    p = jnp.exp(s)
    p = p * pl.reciprocal(jnp.sum(p, axis=-1, keepdims=True), approx=True)
    o = lax.dot_general(p.astype(v.dtype), v,
                        dimension_numbers=(((2,), (1,)), ((0,), (0,))),
                        preferred_element_type=jnp.float32)        # (H, N, D)
    o_ref[0] = o.astype(o_ref.dtype)


def mha_split(x, p, *, num_heads):
    B, N, C = x.shape
    H = num_heads
    D = C // H

    qkv = _pallas_linear(x.reshape(B * N, C), p["w_qkv"], p["b_qkv"],
                         p["w_qkv"].dtype)
    # Quirky head relayout done once by XLA in the wrapper (not in-kernel).
    qkv = jnp.transpose(qkv.reshape(B, N, 3, H, D), (2, 0, 1, 3, 4))
    q = qkv[0].reshape(B, H, N, D)
    k = qkv[1].reshape(B, H, N, D)
    v = qkv[2].reshape(B, H, N, D)

    # TODO(synk): D-minor layout pads lanes at small head dims; kept for
    # guaranteed lowering since this path only exists as a portability net.
    spec = pl.BlockSpec((1, H, N, D), lambda b: (b, 0, 0, 0))
    o = pl.pallas_call(
        _attn_kernel,
        out_shape=jax.ShapeDtypeStruct((B, H, N, D), qkv.dtype),
        grid=(B,),
        in_specs=[spec, spec, spec],
        out_specs=spec,
        compiler_params=pltpu.CompilerParams(dimension_semantics=("parallel",)),
    )(q, k, v)

    out = _pallas_linear(o.reshape(B * N, C), p["w_proj"], p["b_proj"], x.dtype)
    return out.reshape(B, N, C)


# ---------------------------------------------------------------------------
# Parameter preparation (one-time, offline)
# ---------------------------------------------------------------------------
def prepare_params(params, embed_dim, compute_dtype=jnp.bfloat16):
    """Fold the q * sqrt(embed_dim) scale into the q columns of the fused qkv
    weight/bias, reshape biases to 2D, and store everything in the bf16 MXU
    compute dtype (f32 accumulation happens in-kernel)."""
    C = embed_dim
    scale = float(np.sqrt(C))
    col_scale = jnp.concatenate(
        [jnp.full((C,), scale, jnp.float32), jnp.ones((2 * C,), jnp.float32)])
    w_qkv = params["w_qkv"].astype(jnp.float32) * col_scale[None, :]
    b_qkv = params["b_qkv"].astype(jnp.float32) * col_scale
    return {
        "w_qkv": w_qkv.astype(compute_dtype),
        "b_qkv": b_qkv.reshape(1, 3 * C).astype(compute_dtype),
        "w_proj": params["w_proj"].astype(compute_dtype),
        "b_proj": params["b_proj"].reshape(1, C).astype(compute_dtype),
    }


# ---------------------------------------------------------------------------
# Pure-JAX reference (identical math, raw f32 PyTorch-layout params)
# ---------------------------------------------------------------------------
def reference_mha(x, params, num_heads):
    B, N, C = x.shape
    D = C // num_heads
    scale = float(np.sqrt(C))
    qkv = x.reshape(B * N, C) @ params["w_qkv"] + params["b_qkv"]
    qkv = jnp.transpose(qkv.reshape(B, N, 3, num_heads, D), (2, 0, 1, 3, 4))
    q = qkv[0].reshape(B, num_heads, N, D)
    k = qkv[1].reshape(B, num_heads, N, D)
    v = qkv[2].reshape(B, num_heads, N, D)
    s = jnp.einsum("bhnd,bhmd->bhnm", q * scale, k)
    p = jax.nn.softmax(s, axis=-1)
    o = jnp.einsum("bhnm,bhmd->bhnd", p, v).reshape(B, N, C)
    out = o.reshape(B * N, C) @ params["w_proj"] + params["b_proj"]
    return out.reshape(B, N, C)


def init_params(key, embed_dim):
    k1, k2, k3, k4 = jax.random.split(key, 4)
    return {
        "w_qkv": 0.02 * jax.random.normal(k1, (embed_dim, 3 * embed_dim), jnp.float32),
        "b_qkv": 0.02 * jax.random.normal(k2, (3 * embed_dim,), jnp.float32),
        "w_proj": 0.02 * jax.random.normal(k3, (embed_dim, embed_dim), jnp.float32),
        "b_proj": 0.02 * jax.random.normal(k4, (embed_dim,), jnp.float32),
    }


if __name__ == "__main__":
    B, N, C, H = 2, 16, 32, 4     # batch, tokens, embed_dim, heads (bias=True, drop=0.0)
    key = jax.random.PRNGKey(0)
    kx, kp = jax.random.split(key)
    x = jax.random.normal(kx, (B, N, C), jnp.float32)
    raw_params = init_params(kp, C)
    prepped = prepare_params(raw_params, C)

    fused = jax.jit(functools.partial(mha_fused, num_heads=H))
    split = jax.jit(functools.partial(mha_split, num_heads=H))

    try:
        out = jax.block_until_ready(fused(x, prepped))
    except Exception:
        # Portability net: if Mosaic on this chip / jax version cannot lower the
        # in-kernel (rows, C) <-> (Bt*H, N, D) raw relayout, use the split path.
        out = jax.block_until_ready(split(x, prepped))

    ref = reference_mha(x, raw_params, H)
    assert out.shape == (B, N, C) and out.dtype == x.dtype
    # Tolerance accounts for bf16 MXU inputs + approx-EUP softmax reciprocal.
    np.testing.assert_allclose(np.asarray(out, np.float32), np.asarray(ref),
                               rtol=5e-2, atol=3e-3)

    print("KERNEL_OK")
</pallas_src>

<mosaic_0001>
module attributes {stable_mosaic.version = 11 : i64} {
  func.func @_fused_mha_kernel(%arg0: i32, %arg1: memref<1x16x32xf32, #tpu.memory_space<vmem>>, %arg2: memref<32x96xbf16, #tpu.memory_space<vmem>>, %arg3: memref<1x96xbf16, #tpu.memory_space<vmem>>, %arg4: memref<32x32xbf16, #tpu.memory_space<vmem>>, %arg5: memref<1x32xbf16, #tpu.memory_space<vmem>>, %arg6: memref<1x16x32xf32, #tpu.memory_space<vmem>>) attributes {dimension_semantics = [#tpu.dimension_semantics<parallel>], iteration_bounds = array<i64: 2>, scalar_prefetch = 0 : i64, scratch_operands = 0 : i64, tpu.core_type = #tpu.core_type<tc>, window_params = [{transform_indices = @transform_0, window_bounds = array<i64: 1, 16, 32>}, {pipeline_mode = #tpu.pipeline_mode<synchronous>, transform_indices = @transform_1, window_bounds = array<i64: 32, 96>}, {pipeline_mode = #tpu.pipeline_mode<synchronous>, transform_indices = @transform_2, window_bounds = array<i64: 1, 96>}, {pipeline_mode = #tpu.pipeline_mode<synchronous>, transform_indices = @transform_3, window_bounds = array<i64: 32, 32>}, {pipeline_mode = #tpu.pipeline_mode<synchronous>, transform_indices = @transform_4, window_bounds = array<i64: 1, 32>}, {transform_indices = @transform_5, window_bounds = array<i64: 1, 16, 32>}]} {
    %c0 = arith.constant 0 : index
    %c0_0 = arith.constant 0 : index
    %c0_1 = arith.constant 0 : index
    %0 = vector.load %arg1[%c0, %c0_0, %c0_1] : memref<1x16x32xf32, #tpu.memory_space<vmem>>, vector<1x16x32xf32>
    %1 = vector.shape_cast %0 : vector<1x16x32xf32> to vector<16x32xf32>
    %2 = arith.truncf %1 : vector<16x32xf32> to vector<16x32xbf16>
    %c0_2 = arith.constant 0 : index
    %c0_3 = arith.constant 0 : index
    %3 = vector.load %arg2[%c0_2, %c0_3] : memref<32x96xbf16, #tpu.memory_space<vmem>>, vector<32x96xbf16>
    %cst = arith.constant dense<0.000000e+00> : vector<16x96xf32>
    %4 = tpu.matmul %2, %3, %cst {dimension_numbers = #tpu.dot_dimension_numbers<[1], [0], [0], [1], [0, 0, 1, 1], [], []>} : vector<16x32xbf16>, vector<32x96xbf16>, vector<16x96xf32> -> vector<16x96xf32>
    %c0_4 = arith.constant 0 : index
    %c0_5 = arith.constant 0 : index
    %5 = vector.load %arg3[%c0_4, %c0_5] : memref<1x96xbf16, #tpu.memory_space<vmem>>, vector<1x96xbf16>
    %6 = arith.extf %5 : vector<1x96xbf16> to vector<1x96xf32>
    %7 = vector.broadcast %6 : vector<1x96xf32> to vector<16x96xf32>
    %8 = arith.addf %4, %7 : vector<16x96xf32>
    %9 = vector.extract_strided_slice %8 {offsets = [0, 0], sizes = [16, 32], strides = [1, 1]} : vector<16x96xf32> to vector<16x32xf32>
    %10 = vector.shape_cast %9 : vector<16x32xf32> to vector<4x16x8xf32>
    %11 = arith.truncf %10 : vector<4x16x8xf32> to vector<4x16x8xbf16>
    %12 = vector.extract_strided_slice %8 {offsets = [0, 32], sizes = [16, 32], strides = [1, 1]} : vector<16x96xf32> to vector<16x32xf32>
    %13 = vector.shape_cast %12 : vector<16x32xf32> to vector<4x16x8xf32>
    %14 = arith.truncf %13 : vector<4x16x8xf32> to vector<4x16x8xbf16>
    %15 = vector.extract_strided_slice %8 {offsets = [0, 64], sizes = [16, 32], strides = [1, 1]} : vector<16x96xf32> to vector<16x32xf32>
    %16 = vector.shape_cast %15 : vector<16x32xf32> to vector<4x16x8xf32>
    %17 = arith.truncf %16 : vector<4x16x8xf32> to vector<4x16x8xbf16>
    %cst_6 = arith.constant dense<0.000000e+00> : vector<4x16x16xf32>
    %18 = tpu.matmul %11, %14, %cst_6 {dimension_numbers = #tpu.dot_dimension_numbers<[2], [2], [1], [1], [0, 0, 0, 1, 1, 1], [0], [0]>} : vector<4x16x8xbf16>, vector<4x16x8xbf16>, vector<4x16x16xf32> -> vector<4x16x16xf32>
    %cst_7 = arith.constant dense<0xFF800000> : vector<4x16xf32>
    %19 = vector.multi_reduction <maximumf>, %18, %cst_7 [2] : vector<4x16x16xf32> to vector<4x16xf32>
    %20 = vector.shape_cast %19 : vector<4x16xf32> to vector<4x16x1xf32>
    %21 = vector.broadcast %20 : vector<4x16x1xf32> to vector<4x16x16xf32>
    %22 = arith.subf %18, %21 : vector<4x16x16xf32>
    %23 = math.exp %22 : vector<4x16x16xf32>
    %cst_8 = arith.constant dense<0.000000e+00> : vector<4x16xf32>
    %24 = vector.multi_reduction <add>, %23, %cst_8 [2] : vector<4x16x16xf32> to vector<4x16xf32>
    %25 = vector.shape_cast %24 : vector<4x16xf32> to vector<4x16x1xf32>
    %26 = tpu.reciprocal %25 {approx = true} : vector<4x16x1xf32> -> vector<4x16x1xf32>
    %27 = vector.broadcast %26 : vector<4x16x1xf32> to vector<4x16x16xf32>
    %28 = arith.mulf %23, %27 : vector<4x16x16xf32>
    %29 = arith.truncf %28 : vector<4x16x16xf32> to vector<4x16x16xbf16>
    %cst_9 = arith.constant dense<0.000000e+00> : vector<4x16x8xf32>
    %30 = tpu.matmul %29, %17, %cst_9 {dimension_numbers = #tpu.dot_dimension_numbers<[2], [1], [1], [2], [0, 0, 0, 1, 1, 2], [0], [0]>} : vector<4x16x16xbf16>, vector<4x16x8xbf16>, vector<4x16x8xf32> -> vector<4x16x8xf32>
    %31 = vector.shape_cast %30 : vector<4x16x8xf32> to vector<16x32xf32>
    %32 = arith.truncf %31 : vector<16x32xf32> to vector<16x32xbf16>
    %c0_10 = arith.constant 0 : index
    %c0_11 = arith.constant 0 : index
    %33 = vector.load %arg4[%c0_10, %c0_11] : memref<32x32xbf16, #tpu.memory_space<vmem>>, vector<32x32xbf16>
    %cst_12 = arith.constant dense<0.000000e+00> : vector<16x32xf32>
    %34 = tpu.matmul %32, %33, %cst_12 {dimension_numbers = #tpu.dot_dimension_numbers<[1], [0], [0], [1], [0, 0, 1, 1], [], []>} : vector<16x32xbf16>, vector<32x32xbf16>, vector<16x32xf32> -> vector<16x32xf32>
    %c0_13 = arith.constant 0 : index
    %c0_14 = arith.constant 0 : index
    %35 = vector.load %arg5[%c0_13, %c0_14] : memref<1x32xbf16, #tpu.memory_space<vmem>>, vector<1x32xbf16>
    %36 = arith.extf %35 : vector<1x32xbf16> to vector<1x32xf32>
    %37 = vector.broadcast %36 : vector<1x32xf32> to vector<16x32xf32>
    %38 = arith.addf %34, %37 : vector<16x32xf32>
    %39 = vector.shape_cast %38 : vector<16x32xf32> to vector<1x16x32xf32>
    %c0_15 = arith.constant 0 : index
    %c0_16 = arith.constant 0 : index
    %c0_17 = arith.constant 0 : index
    %40 = vector.load %arg6[%c0_15, %c0_16, %c0_17] : memref<1x16x32xf32, #tpu.memory_space<vmem>>, vector<1x16x32xf32>
    tpu.vector_store %arg6[%c0_15, %c0_16, %c0_17], %39 {strides = array<i32>} : memref<1x16x32xf32, #tpu.memory_space<vmem>>, vector<1x16x32xf32>,
    return
  }
  func.func @transform_0(%arg0: i32) -> (i32, i32, i32) {
    %c0_i32 = arith.constant 0 : i32
    %c0_i32_0 = arith.constant 0 : i32
    %c0_i32_1 = arith.constant 0 : i32
    return %arg0, %c0_i32, %c0_i32_0 : i32, i32, i32
  }
  func.func @transform_1(%arg0: i32) -> (i32, i32) {
    %c0_i32 = arith.constant 0 : i32
    %c0_i32_0 = arith.constant 0 : i32
    %c0_i32_1 = arith.constant 0 : i32
    return %c0_i32, %c0_i32_0 : i32, i32
  }
  func.func @transform_2(%arg0: i32) -> (i32, i32) {
    %c0_i32 = arith.constant 0 : i32
    %c0_i32_0 = arith.constant 0 : i32
    %c0_i32_1 = arith.constant 0 : i32
    return %c0_i32, %c0_i32_0 : i32, i32
  }
  func.func @transform_3(%arg0: i32) -> (i32, i32) {
    %c0_i32 = arith.constant 0 : i32
    %c0_i32_0 = arith.constant 0 : i32
    %c0_i32_1 = arith.constant 0 : i32
    return %c0_i32, %c0_i32_0 : i32, i32
  }
  func.func @transform_4(%arg0: i32) -> (i32, i32) {
    %c0_i32 = arith.constant 0 : i32
    %c0_i32_0 = arith.constant 0 : i32
    %c0_i32_1 = arith.constant 0 : i32
    return %c0_i32, %c0_i32_0 : i32, i32
  }
  func.func @transform_5(%arg0: i32) -> (i32, i32, i32) {
    %c0_i32 = arith.constant 0 : i32
    %c0_i32_0 = arith.constant 0 : i32
    %c0_i32_1 = arith.constant 0 : i32
    return %arg0, %c0_i32, %c0_i32_0 : i32, i32, i32
  }
}

module attributes {stable_mosaic.version = 11 : i64} {
  func.func @_linear_kernel(%arg0: i32, %arg1: memref<32x32xf32, #tpu.memory_space<vmem>>, %arg2: memref<32x96xbf16, #tpu.memory_space<vmem>>, %arg3: memref<1x96xbf16, #tpu.memory_space<vmem>>, %arg4: memref<32x96xbf16, #tpu.memory_space<vmem>>) attributes {dimension_semantics = [#tpu.dimension_semantics<parallel>], iteration_bounds = array<i64: 1>, scalar_prefetch = 0 : i64, scratch_operands = 0 : i64, tpu.core_type = #tpu.core_type<tc>, window_params = [{transform_indices = @transform_0, window_bounds = array<i64: 32, 32>}, {pipeline_mode = #tpu.pipeline_mode<synchronous>, transform_indices = @transform_1, window_bounds = array<i64: 32, 96>}, {pipeline_mode = #tpu.pipeline_mode<synchronous>, transform_indices = @transform_2, window_bounds = array<i64: 1, 96>}, {transform_indices = @transform_3, window_bounds = array<i64: 32, 96>}]} {
    %c0 = arith.constant 0 : index
    %c0_0 = arith.constant 0 : index
    %0 = vector.load %arg1[%c0, %c0_0] : memref<32x32xf32, #tpu.memory_space<vmem>>, vector<32x32xf32>
    %1 = arith.truncf %0 : vector<32x32xf32> to vector<32x32xbf16>
    %c0_1 = arith.constant 0 : index
    %c0_2 = arith.constant 0 : index
    %2 = vector.load %arg2[%c0_1, %c0_2] : memref<32x96xbf16, #tpu.memory_space<vmem>>, vector<32x96xbf16>
    %cst = arith.constant dense<0.000000e+00> : vector<32x96xf32>
    %3 = tpu.matmul %1, %2, %cst {dimension_numbers = #tpu.dot_dimension_numbers<[1], [0], [0], [1], [0, 0, 1, 1], [], []>} : vector<32x32xbf16>, vector<32x96xbf16>, vector<32x96xf32> -> vector<32x96xf32>
    %c0_3 = arith.constant 0 : index
    %c0_4 = arith.constant 0 : index
    %4 = vector.load %arg3[%c0_3, %c0_4] : memref<1x96xbf16, #tpu.memory_space<vmem>>, vector<1x96xbf16>
    %5 = arith.extf %4 : vector<1x96xbf16> to vector<1x96xf32>
    %6 = vector.broadcast %5 : vector<1x96xf32> to vector<32x96xf32>
    %7 = arith.addf %3, %6 : vector<32x96xf32>
    %8 = arith.truncf %7 : vector<32x96xf32> to vector<32x96xbf16>
    %c0_5 = arith.constant 0 : index
    %c0_6 = arith.constant 0 : index
    %9 = vector.load %arg4[%c0_5, %c0_6] : memref<32x96xbf16, #tpu.memory_space<vmem>>, vector<32x96xbf16>
    tpu.vector_store %arg4[%c0_5, %c0_6], %8 {strides = array<i32>} : memref<32x96xbf16, #tpu.memory_space<vmem>>, vector<32x96xbf16>,
    return
  }
  func.func @transform_0(%arg0: i32) -> (i32, i32) {
    %c0_i32 = arith.constant 0 : i32
    %c0_i32_0 = arith.constant 0 : i32
    return %arg0, %c0_i32 : i32, i32
  }
  func.func @transform_1(%arg0: i32) -> (i32, i32) {
    %c0_i32 = arith.constant 0 : i32
    %c0_i32_0 = arith.constant 0 : i32
    %c0_i32_1 = arith.constant 0 : i32
    return %c0_i32, %c0_i32_0 : i32, i32
  }
  func.func @transform_2(%arg0: i32) -> (i32, i32) {
    %c0_i32 = arith.constant 0 : i32
    %c0_i32_0 = arith.constant 0 : i32
    %c0_i32_1 = arith.constant 0 : i32
    return %c0_i32, %c0_i32_0 : i32, i32
  }
  func.func @transform_3(%arg0: i32) -> (i32, i32) {
    %c0_i32 = arith.constant 0 : i32
    %c0_i32_0 = arith.constant 0 : i32
    return %arg0, %c0_i32 : i32, i32
  }
}

module attributes {stable_mosaic.version = 11 : i64} {
  func.func @_attn_kernel(%arg0: i32, %arg1: memref<1x4x16x8xbf16, #tpu.memory_space<vmem>>, %arg2: memref<1x4x16x8xbf16, #tpu.memory_space<vmem>>, %arg3: memref<1x4x16x8xbf16, #tpu.memory_space<vmem>>, %arg4: memref<1x4x16x8xbf16, #tpu.memory_space<vmem>>) attributes {dimension_semantics = [#tpu.dimension_semantics<parallel>], iteration_bounds = array<i64: 2>, scalar_prefetch = 0 : i64, scratch_operands = 0 : i64, tpu.core_type = #tpu.core_type<tc>, window_params = [{transform_indices = @transform_0, window_bounds = array<i64: 1, 4, 16, 8>}, {transform_indices = @transform_1, window_bounds = array<i64: 1, 4, 16, 8>}, {transform_indices = @transform_2, window_bounds = array<i64: 1, 4, 16, 8>}, {transform_indices = @transform_3, window_bounds = array<i64: 1, 4, 16, 8>}]} {
    %c0 = arith.constant 0 : index
    %c0_0 = arith.constant 0 : index
    %c0_1 = arith.constant 0 : index
    %c0_2 = arith.constant 0 : index
    %0 = vector.load %arg1[%c0, %c0_0, %c0_1, %c0_2] : memref<1x4x16x8xbf16, #tpu.memory_space<vmem>>, vector<1x4x16x8xbf16>
    %1 = vector.shape_cast %0 : vector<1x4x16x8xbf16> to vector<4x16x8xbf16>
    %c0_3 = arith.constant 0 : index
    %c0_4 = arith.constant 0 : index
    %c0_5 = arith.constant 0 : index
    %c0_6 = arith.constant 0 : index
    %2 = vector.load %arg2[%c0_3, %c0_4, %c0_5, %c0_6] : memref<1x4x16x8xbf16, #tpu.memory_space<vmem>>, vector<1x4x16x8xbf16>
    %3 = vector.shape_cast %2 : vector<1x4x16x8xbf16> to vector<4x16x8xbf16>
    %c0_7 = arith.constant 0 : index
    %c0_8 = arith.constant 0 : index
    %c0_9 = arith.constant 0 : index
    %c0_10 = arith.constant 0 : index
    %4 = vector.load %arg3[%c0_7, %c0_8, %c0_9, %c0_10] : memref<1x4x16x8xbf16, #tpu.memory_space<vmem>>, vector<1x4x16x8xbf16>
    %5 = vector.shape_cast %4 : vector<1x4x16x8xbf16> to vector<4x16x8xbf16>
    %cst = arith.constant dense<0.000000e+00> : vector<4x16x16xf32>
    %6 = tpu.matmul %1, %3, %cst {dimension_numbers = #tpu.dot_dimension_numbers<[2], [2], [1], [1], [0, 0, 0, 1, 1, 1], [0], [0]>} : vector<4x16x8xbf16>, vector<4x16x8xbf16>, vector<4x16x16xf32> -> vector<4x16x16xf32>
    %cst_11 = arith.constant dense<0xFF800000> : vector<4x16xf32>
    %7 = vector.multi_reduction <maximumf>, %6, %cst_11 [2] : vector<4x16x16xf32> to vector<4x16xf32>
    %8 = vector.shape_cast %7 : vector<4x16xf32> to vector<4x16x1xf32>
    %9 = vector.broadcast %8 : vector<4x16x1xf32> to vector<4x16x16xf32>
    %10 = arith.subf %6, %9 : vector<4x16x16xf32>
    %11 = math.exp %10 : vector<4x16x16xf32>
    %cst_12 = arith.constant dense<0.000000e+00> : vector<4x16xf32>
    %12 = vector.multi_reduction <add>, %11, %cst_12 [2] : vector<4x16x16xf32> to vector<4x16xf32>
    %13 = vector.shape_cast %12 : vector<4x16xf32> to vector<4x16x1xf32>
    %14 = tpu.reciprocal %13 {approx = true} : vector<4x16x1xf32> -> vector<4x16x1xf32>
    %15 = vector.broadcast %14 : vector<4x16x1xf32> to vector<4x16x16xf32>
    %16 = arith.mulf %11, %15 : vector<4x16x16xf32>
    %17 = arith.truncf %16 : vector<4x16x16xf32> to vector<4x16x16xbf16>
    %cst_13 = arith.constant dense<0.000000e+00> : vector<4x16x8xf32>
    %18 = tpu.matmul %17, %5, %cst_13 {dimension_numbers = #tpu.dot_dimension_numbers<[2], [1], [1], [2], [0, 0, 0, 1, 1, 2], [0], [0]>} : vector<4x16x16xbf16>, vector<4x16x8xbf16>, vector<4x16x8xf32> -> vector<4x16x8xf32>
    %19 = arith.truncf %18 : vector<4x16x8xf32> to vector<4x16x8xbf16>
    %c0_14 = arith.constant 0 : index
    %c0_15 = arith.constant 0 : index
    %c0_16 = arith.constant 0 : index
    %c0_17 = arith.constant 0 : index
    %20 = vector.load %arg4[%c0_14, %c0_15, %c0_16, %c0_17] : memref<1x4x16x8xbf16, #tpu.memory_space<vmem>>, vector<1x4x16x8xbf16>
    %21 = vector.shape_cast %20 : vector<1x4x16x8xbf16> to vector<4x16x8xbf16>
    %22 = vector.shape_cast %19 : vector<4x16x8xbf16> to vector<1x4x16x8xbf16>
    tpu.vector_store %arg4[%c0_14, %c0_15, %c0_16, %c0_17], %22 {strides = array<i32>} : memref<1x4x16x8xbf16, #tpu.memory_space<vmem>>, vector<1x4x16x8xbf16>,
    return
  }
  func.func @transform_0(%arg0: i32) -> (i32, i32, i32, i32) {
    %c0_i32 = arith.constant 0 : i32
    %c0_i32_0 = arith.constant 0 : i32
    %c0_i32_1 = arith.constant 0 : i32
    %c0_i32_2 = arith.constant 0 : i32
    return %arg0, %c0_i32, %c0_i32_0, %c0_i32_1 : i32, i32, i32, i32
  }
  func.func @transform_1(%arg0: i32) -> (i32, i32, i32, i32) {
    %c0_i32 = arith.constant 0 : i32
    %c0_i32_0 = arith.constant 0 : i32
    %c0_i32_1 = arith.constant 0 : i32
    %c0_i32_2 = arith.constant 0 : i32
    return %arg0, %c0_i32, %c0_i32_0, %c0_i32_1 : i32, i32, i32, i32
  }
  func.func @transform_2(%arg0: i32) -> (i32, i32, i32, i32) {
    %c0_i32 = arith.constant 0 : i32
    %c0_i32_0 = arith.constant 0 : i32
    %c0_i32_1 = arith.constant 0 : i32
    %c0_i32_2 = arith.constant 0 : i32
    return %arg0, %c0_i32, %c0_i32_0, %c0_i32_1 : i32, i32, i32, i32
  }
  func.func @transform_3(%arg0: i32) -> (i32, i32, i32, i32) {
    %c0_i32 = arith.constant 0 : i32
    %c0_i32_0 = arith.constant 0 : i32
    %c0_i32_1 = arith.constant 0 : i32
    %c0_i32_2 = arith.constant 0 : i32
    return %arg0, %c0_i32, %c0_i32_0, %c0_i32_1 : i32, i32, i32, i32
  }
}

module attributes {stable_mosaic.version = 11 : i64} {
  func.func @_linear_kernel(%arg0: i32, %arg1: memref<32x32xbf16, #tpu.memory_space<vmem>>, %arg2: memref<32x32xbf16, #tpu.memory_space<vmem>>, %arg3: memref<1x32xbf16, #tpu.memory_space<vmem>>, %arg4: memref<32x32xf32, #tpu.memory_space<vmem>>) attributes {dimension_semantics = [#tpu.dimension_semantics<parallel>], iteration_bounds = array<i64: 1>, scalar_prefetch = 0 : i64, scratch_operands = 0 : i64, tpu.core_type = #tpu.core_type<tc>, window_params = [{transform_indices = @transform_0, window_bounds = array<i64: 32, 32>}, {pipeline_mode = #tpu.pipeline_mode<synchronous>, transform_indices = @transform_1, window_bounds = array<i64: 32, 32>}, {pipeline_mode = #tpu.pipeline_mode<synchronous>, transform_indices = @transform_2, window_bounds = array<i64: 1, 32>}, {transform_indices = @transform_3, window_bounds = array<i64: 32, 32>}]} {
    %c0 = arith.constant 0 : index
    %c0_0 = arith.constant 0 : index
    %0 = vector.load %arg1[%c0, %c0_0] : memref<32x32xbf16, #tpu.memory_space<vmem>>, vector<32x32xbf16>
    %c0_1 = arith.constant 0 : index
    %c0_2 = arith.constant 0 : index
    %1 = vector.load %arg2[%c0_1, %c0_2] : memref<32x32xbf16, #tpu.memory_space<vmem>>, vector<32x32xbf16>
    %cst = arith.constant dense<0.000000e+00> : vector<32x32xf32>
    %2 = tpu.matmul %0, %1, %cst {dimension_numbers = #tpu.dot_dimension_numbers<[1], [0], [0], [1], [0, 0, 1, 1], [], []>} : vector<32x32xbf16>, vector<32x32xbf16>, vector<32x32xf32> -> vector<32x32xf32>
    %c0_3 = arith.constant 0 : index
    %c0_4 = arith.constant 0 : index
    %3 = vector.load %arg3[%c0_3, %c0_4] : memref<1x32xbf16, #tpu.memory_space<vmem>>, vector<1x32xbf16>
    %4 = arith.extf %3 : vector<1x32xbf16> to vector<1x32xf32>
    %5 = vector.broadcast %4 : vector<1x32xf32> to vector<32x32xf32>
    %6 = arith.addf %2, %5 : vector<32x32xf32>
    %c0_5 = arith.constant 0 : index
    %c0_6 = arith.constant 0 : index
    %7 = vector.load %arg4[%c0_5, %c0_6] : memref<32x32xf32, #tpu.memory_space<vmem>>, vector<32x32xf32>
    tpu.vector_store %arg4[%c0_5, %c0_6], %6 {strides = array<i32>} : memref<32x32xf32, #tpu.memory_space<vmem>>, vector<32x32xf32>,
    return
  }
  func.func @transform_0(%arg0: i32) -> (i32, i32) {
    %c0_i32 = arith.constant 0 : i32
    %c0_i32_0 = arith.constant 0 : i32
    return %arg0, %c0_i32 : i32, i32
  }
  func.func @transform_1(%arg0: i32) -> (i32, i32) {
    %c0_i32 = arith.constant 0 : i32
    %c0_i32_0 = arith.constant 0 : i32
    %c0_i32_1 = arith.constant 0 : i32
    return %c0_i32, %c0_i32_0 : i32, i32
  }
  func.func @transform_2(%arg0: i32) -> (i32, i32) {
    %c0_i32 = arith.constant 0 : i32
    %c0_i32_0 = arith.constant 0 : i32
    %c0_i32_1 = arith.constant 0 : i32
    return %c0_i32, %c0_i32_0 : i32, i32
  }
  func.func @transform_3(%arg0: i32) -> (i32, i32) {
    %c0_i32 = arith.constant 0 : i32
    %c0_i32_0 = arith.constant 0 : i32
    return %arg0, %c0_i32 : i32, i32
  }
}

</mosaic_0001>

<llo_original>
// kernel: mha_split.3
$region0: #{mha_split.3}
  #allocation0 [shape = 'u32[]', space=smem, size = 0x4, offset = 0x4, fixed_abs, tag = 'smem constant byte address 0x4 - core index']
  #allocation1 [shape = 'u32[144,128]{1,0:T(1,128)}', space=vmem, size = 0x12000, scoped, tag = 'internal scratch']
  %s0 = inlined_call_operand.hbm [shape: f32[32,32], index: 0, kind: input, shape index: {}]
  %s1 = inlined_call_operand.vmem [shape: bf16[32,96], index: 1, kind: input, shape index: {}]
  %s2 = inlined_call_operand.vmem [shape: bf16[1,96], index: 2, kind: input, shape index: {}]
  %s3 = inlined_call_operand.vmem [shape: bf16[32,96], index: 3, kind: output, shape index: {}]
  %s4 = sld [smem:[#allocation0]]
  $region26: #{mha_split.3} parent=0
    _
  %s6 = ssub.s32 1, %s4
  %s7 = scalar_select 0, %s6, %s4
  $region1: #{mha_split.3} parent=0
    #allocation2 [shape = 'u8[16384]{0}', space=vmem, size = 0x4000, scoped, tag = 'input window, operand 0, single buffered']
    #allocation3 [shape = 's32[1]{0}', space=sflag, size = 0x4, scoped, tag = 'scoped memory for mha_split.3']
    %8 = vsyncpa [#allocation3], 0
    // Predicated region
    $region2: #{mha_split.3} parent=1 // pred_check
      _
    $region3: #{mha_split.3} parent=1 // pred_check_branch
      %10 = sbr.rel (0) target = $region5
    $region4: #{mha_split.3} parent=1 // pred_region
      %s12 = ssub.s32 512, 512
      %13 = vsyncadd [#allocation3], %s12
      %s14 = sshll.u32 [#allocation2], 4
      %s15 = int_to_ptr.vmem [resolvable:$true] %s14
      %20 = dma.hbm_to_vmem [thread:$0]  %s0, 512, %s15, [#allocation3], 128, 128, 8
    $region5: #{mha_split.3} parent=1 // pred_fallthru
      _
    // Predicated region
    $region6: #{mha_split.3} parent=1 // pred_check
      _
    $region7: #{mha_split.3} parent=1 // pred_check_branch
      %22 = sbr.rel (0) target = $region9
    $region8: #{mha_split.3} parent=1 // pred_region
      _
    $region9: #{mha_split.3} parent=1 // pred_fallthru
      _
    // Predicated region
    $region10: #{mha_split.3} parent=1 // pred_check
      _
    $region11: #{mha_split.3} parent=1 // pred_check_branch
      %24 = sbr.rel (0) target = $region13
    $region12: #{mha_split.3} parent=1 // pred_region
      _
    $region13: #{mha_split.3} parent=1 // pred_fallthru
      _
    // Predicated region
    $region14: #{mha_split.3} parent=1 // pred_check
      _
    $region15: #{mha_split.3} parent=1 // pred_check_branch
      %26 = sbr.rel (0) target = $region17
    $region16: #{mha_split.3} parent=1 // pred_region
      %27 = dma.done [#allocation3], 512
    $region17: #{mha_split.3} parent=1 // pred_fallthru
      _
    %v29 = vld [vmem:[#allocation2] sm:$0xff]
    %v30 = vld [vmem:[#allocation2 + $0x8] sm:$0xff]
    %v31 = vld [vmem:[#allocation2 + $0x10] sm:$0xff]
    %v32 = vld [vmem:[#allocation2 + $0x18] sm:$0xff]
    %v33 = vpack.c.bf16 %v30, %v29
    %v34 = vpack.c.bf16 %v32, %v31
    %v35 = vld [vmem:[%s1] sm:$0xf]
    %v36 = vld [vmem:[%s1 + $0x4] sm:$0xf]
    %v37 = vld [vmem:[%s1 + $0x8] sm:$0xf]
    %v38 = vld [vmem:[%s1 + $0xc] sm:$0xf]
    %v39 = vld [vmem:[%s2] sm:$0x1]
    %v40 = vunpack.c.l.bf16 %v39
    %v41 = vlaneseq
    %v42 = vshrl.u32 %v41, 7
    %v43 = vsub.s32 0, %v42
    %v44 = vrot.slane %v40, %v43
    %v49 = vunpack.c.l.b16 %v35
    %v50 = vunpack.c.l.b16 %v36
    %v51 = vunpack.c.l.b16 %v37
    %v52 = vunpack.c.l.b16 %v38
    %v53 = vpack.c.b16 %v50, %v49
    %v54 = vpack.c.b16 %v52, %v51
    %vm57 = vcmask 261120
    %v59 = vsel %vm57, %v33, 0
    %v62 = vsel %vm57, %v34, 0
    %64 = vmatprep.subr.bf16.mxu0 0
    %65 = vmatpush1.bf16.msra.mxu0 %v53
    %66 = vmatprep.subr.bf16.mxu0 0
    %67 = vmatpush1.bf16.msra.mxu0 %v54
    %68 = vmatprep.subr.bf16.mxu0 0
    %69 = vmatpush1.bf16.msra.mxu0 0
    %70 = vmatprep.subr.bf16.mxu0 0
    %71 = vmatpush1.bf16.msra.mxu0 0
    %72 = vmatprep.subr.bf16.mxu0 0
    %73 = vmatpush1.bf16.msra.mxu0 0
    %74 = vmatprep.subr.bf16.mxu0 0
    %75 = vmatpush1.bf16.msra.mxu0 0
    %76 = vmatprep.subr.bf16.mxu0 0
    %77 = vmatpush1.bf16.msra.mxu0 0
    %78 = vmatprep.subr.bf16.mxu0 0
    %79 = vmatpush1.bf16.msra.mxu0 0
    %80 = vmatprep.subr.bf16.mxu0 0
    %81 = vmatpush1.bf16.msra.mxu0 0
    %82 = vmatprep.subr.bf16.mxu0 0
    %83 = vmatpush1.bf16.msra.mxu0 0
    %84 = vmatprep.subr.bf16.mxu0 0
    %85 = vmatpush1.bf16.msra.mxu0 0
    %86 = vmatprep.subr.bf16.mxu0 0
    %87 = vmatpush1.bf16.msra.mxu0 0
    %88 = vmatprep.subr.bf16.mxu0 0
    %89 = vmatpush1.bf16.msra.mxu0 0
    %90 = vmatprep.subr.bf16.mxu0 0
    %91 = vmatpush1.bf16.msra.mxu0 0
    %92 = vmatprep.subr.bf16.mxu0 0
    %93 = vmatpush1.bf16.msra.mxu0 0
    %94 = vmatprep.subr.bf16.mxu0 0
    %95 = vmatpush1.bf16.msra.mxu0 0
    %96 = vmatprep.mubr.bf16.mxu0 0
    %97 = vmatmul.mubr.bf16.gmra.mrb[0].mxu0 %v59
    %v98 = vpop.f32.mrb[0].mxu0
    %v99 = vadd.f32 %v44, %v98
    %v100 = vpop.f32.mrb[0].mxu0
    %v101 = vpop.f32.mrb[0].mxu0
    %v102 = vadd.f32 %v44, %v101
    %v103 = vpop.f32.mrb[0].mxu0
    %104 = vmatprep.mubr.bf16.mxu0 0
    %105 = vmatmul.mubr.bf16.gmra.mrb[0].mxu0 %v62
    %v106 = vpop.f32.mrb[0].mxu0
    %v107 = vadd.f32 %v44, %v106
    %v108 = vpop.f32.mrb[0].mxu0
    %v109 = vpop.f32.mrb[0].mxu0
    %v110 = vadd.f32 %v44, %v109
    %v111 = vpop.f32.mrb[0].mxu0
    %112 = vdwg.mxu0
    %v113 = vpack.c.bf16 %v102, %v99
    %v114 = vpack.c.bf16 %v110, %v107
    %v117 = vunpack.c.l.b16 %v113
    %v118 = vunpack.c.h.b16 %v113
    %v119 = vunpack.c.l.b16 %v114
    %v120 = vunpack.c.h.b16 %v114
    %v121 = vpack.c.b16 %v117, %v117
    %v122 = vpack.c.b16 %v118, %v118
    %v123 = vpack.c.b16 %v119, %v119
    %v124 = vpack.c.b16 %v120, %v120
    %vm129 = vcmask 781312
    %130 = vst.msk [vmem:[%s3] sm:$0xf] %vm129, %v121
    %131 = vst.msk [vmem:[%s3 + $0x4] sm:$0xf] %vm129, %v122
    %132 = vst.msk [vmem:[%s3 + $0x8] sm:$0xf] %vm129, %v123
    %133 = vst.msk [vmem:[%s3 + $0xc] sm:$0xf] %vm129, %v124
    // Predicated region
    $region18: #{mha_split.3} parent=1 // pred_check
      _
    $region19: #{mha_split.3} parent=1 // pred_check_branch
      %135 = sbr.rel (0) target = $region21
    $region20: #{mha_split.3} parent=1 // pred_region
      _
    $region21: #{mha_split.3} parent=1 // pred_fallthru
      _
    // Predicated region
    $region22: #{mha_split.3} parent=1 // pred_check
      _
    $region23: #{mha_split.3} parent=1 // pred_check_branch
      %137 = sbr.rel (0) target = $region25
    $region24: #{mha_split.3} parent=1 // pred_region
      _
    $region25: #{mha_split.3} parent=1 // pred_fallthru
      _
    %138 = vsyncpa [#allocation3], 1

// kernel: mha_split.5
$region0: #{mha_split.5}
  #allocation0 [shape = 'u32[]', space=smem, size = 0x4, offset = 0x4, fixed_abs, tag = 'smem constant byte address 0x4 - core index']
  #allocation1 [shape = 'u32[144,128]{1,0:T(1,128)}', space=vmem, size = 0x12000, scoped, tag = 'internal scratch']
  %s0 = inlined_call_operand.vmem [shape: bf16[32,32], index: 0, kind: input, shape index: {}]
  %s1 = inlined_call_operand.vmem [shape: bf16[32,32], index: 1, kind: input, shape index: {}]
  %s2 = inlined_call_operand.vmem [shape: bf16[1,32], index: 2, kind: input, shape index: {}]
  %s3 = inlined_call_operand.hbm [shape: f32[32,32], index: 3, kind: output, shape index: {}]
  %s4 = sld [smem:[#allocation0]]
  $region22: #{mha_split.5} parent=0
    _
  %s6 = ssub.s32 1, %s4
  %s7 = scalar_select 0, %s6, %s4
  $region1: #{mha_split.5} parent=0
    #allocation2 [shape = 'u8[16384]{0}', space=vmem, size = 0x4000, scoped, tag = 'output window, operand 0, single buffered']
    #allocation3 [shape = 's32[1]{0}', space=sflag, size = 0x4, scoped, tag = 'scoped memory for mha_split.5']
    %8 = vsyncpa [#allocation3], 0
    // Predicated region
    $region2: #{mha_split.5} parent=1 // pred_check
      _
    $region3: #{mha_split.5} parent=1 // pred_check_branch
      %10 = sbr.rel (0) target = $region5
    $region4: #{mha_split.5} parent=1 // pred_region
      _
    $region5: #{mha_split.5} parent=1 // pred_fallthru
      _
    // Predicated region
    $region6: #{mha_split.5} parent=1 // pred_check
      _
    $region7: #{mha_split.5} parent=1 // pred_check_branch
      %12 = sbr.rel (0) target = $region9
    $region8: #{mha_split.5} parent=1 // pred_region
      _
    $region9: #{mha_split.5} parent=1 // pred_fallthru
      _
    // Predicated region
    $region10: #{mha_split.5} parent=1 // pred_check
      _
    $region11: #{mha_split.5} parent=1 // pred_check_branch
      %14 = sbr.rel (0) target = $region13
    $region12: #{mha_split.5} parent=1 // pred_region
      _
    $region13: #{mha_split.5} parent=1 // pred_fallthru
      _
    %v16 = vld [vmem:[%s0] sm:$0xf]
    %v17 = vld [vmem:[%s0 + $0x4] sm:$0xf]
    %v18 = vld [vmem:[%s0 + $0x8] sm:$0xf]
    %v19 = vld [vmem:[%s0 + $0xc] sm:$0xf]
    %v20 = vld [vmem:[%s1] sm:$0xf]
    %v21 = vld [vmem:[%s1 + $0x4] sm:$0xf]
    %v22 = vld [vmem:[%s1 + $0x8] sm:$0xf]
    %v23 = vld [vmem:[%s1 + $0xc] sm:$0xf]
    %v24 = vld [vmem:[%s2] sm:$0x1]
    %v25 = vunpack.c.l.bf16 %v24
    %v26 = vlaneseq
    %v27 = vshrl.u32 %v26, 7
    %v28 = vsub.s32 0, %v27
    %v29 = vrot.slane %v25, %v28
    %v34 = vunpack.c.l.b16 %v16
    %v35 = vunpack.c.l.b16 %v17
    %v36 = vunpack.c.l.b16 %v18
    %v37 = vunpack.c.l.b16 %v19
    %v38 = vpack.c.b16 %v35, %v34
    %v39 = vpack.c.b16 %v37, %v36
    %v44 = vunpack.c.l.b16 %v20
    %v45 = vunpack.c.l.b16 %v21
    %v46 = vunpack.c.l.b16 %v22
    %v47 = vunpack.c.l.b16 %v23
    %v48 = vpack.c.b16 %v45, %v44
    %v49 = vpack.c.b16 %v47, %v46
    %vm52 = vcmask 261120
    %v54 = vsel %vm52, %v38, 0
    %v57 = vsel %vm52, %v39, 0
    %59 = vmatprep.subr.bf16.mxu0 0
    %60 = vmatpush1.bf16.msra.mxu0 %v48
    %61 = vmatprep.subr.bf16.mxu0 0
    %62 = vmatpush1.bf16.msra.mxu0 %v49
    %63 = vmatprep.subr.bf16.mxu0 0
    %64 = vmatpush1.bf16.msra.mxu0 0
    %65 = vmatprep.subr.bf16.mxu0 0
    %66 = vmatpush1.bf16.msra.mxu0 0
    %67 = vmatprep.subr.bf16.mxu0 0
    %68 = vmatpush1.bf16.msra.mxu0 0
    %69 = vmatprep.subr.bf16.mxu0 0
    %70 = vmatpush1.bf16.msra.mxu0 0
    %71 = vmatprep.subr.bf16.mxu0 0
    %72 = vmatpush1.bf16.msra.mxu0 0
    %73 = vmatprep.subr.bf16.mxu0 0
    %74 = vmatpush1.bf16.msra.mxu0 0
    %75 = vmatprep.subr.bf16.mxu0 0
    %76 = vmatpush1.bf16.msra.mxu0 0
    %77 = vmatprep.subr.bf16.mxu0 0
    %78 = vmatpush1.bf16.msra.mxu0 0
    %79 = vmatprep.subr.bf16.mxu0 0
    %80 = vmatpush1.bf16.msra.mxu0 0
    %81 = vmatprep.subr.bf16.mxu0 0
    %82 = vmatpush1.bf16.msra.mxu0 0
    %83 = vmatprep.subr.bf16.mxu0 0
    %84 = vmatpush1.bf16.msra.mxu0 0
    %85 = vmatprep.subr.bf16.mxu0 0
    %86 = vmatpush1.bf16.msra.mxu0 0
    %87 = vmatprep.subr.bf16.mxu0 0
    %88 = vmatpush1.bf16.msra.mxu0 0
    %89 = vmatprep.subr.bf16.mxu0 0
    %90 = vmatpush1.bf16.msra.mxu0 0
    %91 = vmatprep.mubr.bf16.mxu0 0
    %92 = vmatmul.mubr.bf16.gmra.mrb[0].mxu0 %v54
    %v93 = vpop.f32.mrb[0].mxu0
    %v94 = vadd.f32 %v29, %v93
    %v95 = vpop.f32.mrb[0].mxu0
    %v96 = vpop.f32.mrb[0].mxu0
    %v97 = vadd.f32 %v29, %v96
    %v98 = vpop.f32.mrb[0].mxu0
    %99 = vmatprep.mubr.bf16.mxu0 0
    %100 = vmatmul.mubr.bf16.gmra.mrb[0].mxu0 %v57
    %v101 = vpop.f32.mrb[0].mxu0
    %v102 = vadd.f32 %v29, %v101
    %v103 = vpop.f32.mrb[0].mxu0
    %v104 = vpop.f32.mrb[0].mxu0
    %v105 = vadd.f32 %v29, %v104
    %v106 = vpop.f32.mrb[0].mxu0
    %107 = vdwg.mxu0
    %108 = vst.msk [vmem:[#allocation2] sm:$0xff] %vm52, %v94
    %109 = vst.msk [vmem:[#allocation2 + $0x8] sm:$0xff] %vm52, %v97
    %110 = vst.msk [vmem:[#allocation2 + $0x10] sm:$0xff] %vm52, %v102
    %111 = vst.msk [vmem:[#allocation2 + $0x18] sm:$0xff] %vm52, %v105
    // Predicated region
    $region14: #{mha_split.5} parent=1 // pred_check
      _
    $region15: #{mha_split.5} parent=1 // pred_check_branch
      %113 = sbr.rel (0) target = $region17
    $region16: #{mha_split.5} parent=1 // pred_region
      %s115 = ssub.s32 512, 512
      %116 = vsyncadd [#allocation3], %s115
      %s117 = sshll.u32 [#allocation2], 4
      %s118 = int_to_ptr.vmem [resolvable:$true] %s117
      %123 = dma.vmem_to_hbm [thread:$0]  %s118, 512, %s3, [#allocation3], 128, 128, 8
    $region17: #{mha_split.5} parent=1 // pred_fallthru
      _
    // Predicated region
    $region18: #{mha_split.5} parent=1 // pred_check
      _
    $region19: #{mha_split.5} parent=1 // pred_check_branch
      %125 = sbr.rel (0) target = $region21
    $region20: #{mha_split.5} parent=1 // pred_region
      %126 = dma.done [#allocation3], 512
    $region21: #{mha_split.5} parent=1 // pred_fallthru
      _
    %127 = vsyncpa [#allocation3], 1

// kernel: mha_split.4
$region0: #{mha_split.4}
  #allocation0 [shape = 'u32[]', space=smem, size = 0x4, offset = 0x4, fixed_abs, tag = 'smem constant byte address 0x4 - core index']
  #allocation1 [shape = 'u32[144,128]{1,0:T(1,128)}', space=vmem, size = 0x12000, scoped, tag = 'internal scratch']
  %s0 = inlined_call_operand.vmem [shape: bf16[2,4,16,8], index: 0, kind: input, shape index: {}]
  %s1 = inlined_call_operand.vmem [shape: bf16[2,4,16,8], index: 1, kind: input, shape index: {}]
  %s2 = inlined_call_operand.vmem [shape: bf16[2,4,16,8], index: 2, kind: input, shape index: {}]
  %s3 = inlined_call_operand.vmem [shape: bf16[2,4,16,8], index: 3, kind: output, shape index: {}]
  %s4 = sld [smem:[#allocation0]]
  $region45: #{mha_split.4} parent=0
    _
  %s6 = ssub.s32 1, %s4
  %s7 = scalar_select 0, %s6, %s4
  loop: start=0, step=1, limit=4
  $region2: #{mha_split.4} parent=0 // loop_pre_header
    _
  $region3: #{mha_split.4} parent=0 // loop_header
    %s9 = sphi 0, %s13
    %p10 = scmp.ge.s32.totalorder %s9, 4
    %s19 = sphi 0, %s21
    %s22 = sphi 0, %s19
    %s23 = sphi 0, %s22
    %s39 = sphi 0, %s23
    %s45 = sphi 0, %s47
    %s48 = sphi 0, %s45
    %s49 = sphi 0, %s48
    %s65 = sphi 0, %s49
    %s71 = sphi 0, %s73
    %s74 = sphi 0, %s71
    %s75 = sphi 0, %s74
    %s91 = sphi 0, %s75
    %s97 = sphi 0, %s99
    %s100 = sphi 0, %s97
    %s101 = sphi 0, %s100
    %s117 = sphi 0, %s101
  $region4: #{mha_split.4} parent=0 // loop_header_branch
    %12 = sbr.rel (%p10) target = $region8
  $region5: #{mha_split.4} parent=0 // loop_body
    %s14 = ssub.s32 %s9, 1
    %s15 = ssub.s32 %s9, 2
    %s16 = sadd.s32 %s9, 1
    %s17 = ssub.s32 %s9, %s16
    %p18 = scmp.eq.s32.totalorder %s17, 0
    %s20 = sadd.s32 %s19, 1
    %s21 = scalar_select %p18, %s19, %s20
    %p24 = pneg %p18
    %p25 = scmp.eq.s32.totalorder %s9, 1
    %p26 = por %p24, %p25
    %p27 = scmp.ne.s32.totalorder %s19, %s22
    %p28 = scmp.eq.s32.totalorder %s9, 0
    %p29 = por %p27, %p28
    %p30 = scmp.ne.s32.totalorder %s19, %s22
    %p31 = scmp.eq.s32.totalorder %s14, 1
    %p32 = por %p30, %p31
    %p33 = scmp.ne.s32.totalorder %s22, %s23
    %p34 = scmp.eq.s32.totalorder %s14, 0
    %p35 = por %p33, %p34
    %p36 = scmp.ne.s32.totalorder %s22, %s23
    %p37 = scmp.eq.s32.totalorder %s15, 1
    %p38 = por %p36, %p37
    %p40 = scmp.ne.s32.totalorder %s23, %s39
    %p41 = scmp.eq.s32.totalorder %s15, 0
    %p42 = por %p40, %p41
    %s43 = ssub.s32 %s9, %s16
    %p44 = scmp.eq.s32.totalorder %s43, 0
    %s46 = sadd.s32 %s45, 1
    %s47 = scalar_select %p44, %s45, %s46
    %p50 = pneg %p44
    %p51 = scmp.eq.s32.totalorder %s9, 1
    %p52 = por %p50, %p51
    %p53 = scmp.ne.s32.totalorder %s45, %s48
    %p54 = scmp.eq.s32.totalorder %s9, 0
    %p55 = por %p53, %p54
    %p56 = scmp.ne.s32.totalorder %s45, %s48
    %p57 = scmp.eq.s32.totalorder %s14, 1
    %p58 = por %p56, %p57
    %p59 = scmp.ne.s32.totalorder %s48, %s49
    %p60 = scmp.eq.s32.totalorder %s14, 0
    %p61 = por %p59, %p60
    %p62 = scmp.ne.s32.totalorder %s48, %s49
    %p63 = scmp.eq.s32.totalorder %s15, 1
    %p64 = por %p62, %p63
    %p66 = scmp.ne.s32.totalorder %s49, %s65
    %p67 = scmp.eq.s32.totalorder %s15, 0
    %p68 = por %p66, %p67
    %s69 = ssub.s32 %s9, %s16
    %p70 = scmp.eq.s32.totalorder %s69, 0
    %s72 = sadd.s32 %s71, 1
    %s73 = scalar_select %p70, %s71, %s72
    %p76 = pneg %p70
    %p77 = scmp.eq.s32.totalorder %s9, 1
    %p78 = por %p76, %p77
    %p79 = scmp.ne.s32.totalorder %s71, %s74
    %p80 = scmp.eq.s32.totalorder %s9, 0
    %p81 = por %p79, %p80
    %p82 = scmp.ne.s32.totalorder %s71, %s74
    %p83 = scmp.eq.s32.totalorder %s14, 1
    %p84 = por %p82, %p83
    %p85 = scmp.ne.s32.totalorder %s74, %s75
    %p86 = scmp.eq.s32.totalorder %s14, 0
    %p87 = por %p85, %p86
    %p88 = scmp.ne.s32.totalorder %s74, %s75
    %p89 = scmp.eq.s32.totalorder %s15, 1
    %p90 = por %p88, %p89
    %p92 = scmp.ne.s32.totalorder %s75, %s91
    %p93 = scmp.eq.s32.totalorder %s15, 0
    %p94 = por %p92, %p93
    %s95 = ssub.s32 %s9, %s16
    %p96 = scmp.eq.s32.totalorder %s95, 0
    %s98 = sadd.s32 %s97, 1
    %s99 = scalar_select %p96, %s97, %s98
    %p102 = pneg %p96
    %p103 = scmp.eq.s32.totalorder %s9, 1
    %p104 = por %p102, %p103
    %p105 = scmp.ne.s32.totalorder %s97, %s100
    %p106 = scmp.eq.s32.totalorder %s9, 0
    %p107 = por %p105, %p106
    %p108 = scmp.ne.s32.totalorder %s97, %s100
    %p109 = scmp.eq.s32.totalorder %s14, 1
    %p110 = por %p108, %p109
    %p111 = scmp.ne.s32.totalorder %s100, %s101
    %p112 = scmp.eq.s32.totalorder %s14, 0
    %p113 = por %p111, %p112
    %p114 = scmp.ne.s32.totalorder %s100, %s101
    %p115 = scmp.eq.s32.totalorder %s15, 1
    %p116 = por %p114, %p115
    %p118 = scmp.ne.s32.totalorder %s101, %s117
    %p119 = scmp.eq.s32.totalorder %s15, 0
    %p120 = por %p118, %p119
    %p121 = scmp.le.s32.totalorder 1, %s9
    %p122 = scmp.lt.s32.totalorder %s9, 3
    %p123 = pnand %p121, %p122
    %p124 = pneg %p123
    // Predicated region
    $region9: #{mha_split.4} parent=5 // pred_check
      _
    $region10: #{mha_split.4} parent=5 // pred_check_branch
      %126 = sbr.rel (%p123) target = $region12
    $region11: #{mha_split.4} parent=5 // pred_region
      %s127 = ssub.s32 %s9, 1
    $region12: #{mha_split.4} parent=5 // pred_fallthru
      _
    %p128 = scmp.lt.s32.totalorder %s9, 2
    // Predicated region
    $region13: #{mha_split.4} parent=5 // pred_check
      %p129 = pneg %p128
    $region14: #{mha_split.4} parent=5 // pred_check_branch
      %131 = sbr.rel (%p129) target = $region16
    $region15: #{mha_split.4} parent=5 // pred_region
      // Predicated region
      $region17: #{mha_split.4} parent=15 // pred_check
        %p132 = pneg %p29
      $region18: #{mha_split.4} parent=15 // pred_check_branch
        %134 = sbr.rel (%p132) target = $region20
      $region19: #{mha_split.4} parent=15 // pred_region
        %p135 = scmp.lt.s32.totalorder %s9, 1
        %s136 = scalar_select %p135, %s9, 1
        %s137 = smul.addr %s136, 8
        %s138 = smul.addr %s137, 4
        %s139 = scalar_lea.vmem %s0, %s138
      $region20: #{mha_split.4} parent=15 // pred_fallthru
        _
      // Predicated region
      $region21: #{mha_split.4} parent=15 // pred_check
        %p140 = pneg %p55
      $region22: #{mha_split.4} parent=15 // pred_check_branch
        %142 = sbr.rel (%p140) target = $region24
      $region23: #{mha_split.4} parent=15 // pred_region
        %p143 = scmp.lt.s32.totalorder %s9, 1
        %s144 = scalar_select %p143, %s9, 1
        %s145 = smul.addr %s144, 8
        %s146 = smul.addr %s145, 4
        %s147 = scalar_lea.vmem %s1, %s146
      $region24: #{mha_split.4} parent=15 // pred_fallthru
        _
      // Predicated region
      $region25: #{mha_split.4} parent=15 // pred_check
        %p148 = pneg %p81
      $region26: #{mha_split.4} parent=15 // pred_check_branch
        %150 = sbr.rel (%p148) target = $region28
      $region27: #{mha_split.4} parent=15 // pred_region
        %p151 = scmp.lt.s32.totalorder %s9, 1
        %s152 = scalar_select %p151, %s9, 1
        %s153 = smul.addr %s152, 8
        %s154 = smul.addr %s153, 4
        %s155 = scalar_lea.vmem %s2, %s154
      $region28: #{mha_split.4} parent=15 // pred_fallthru
        _
    $region16: #{mha_split.4} parent=5 // pred_fallthru
      _
    %p156 = scmp.le.s32.totalorder 1, %s9
    %p157 = scmp.lt.s32.totalorder %s9, 3
    %p158 = pnand %p156, %p157
    %p159 = pneg %p158
    // Predicated region
    $region29: #{mha_split.4} parent=5 // pred_check
      _
    $region30: #{mha_split.4} parent=5 // pred_check_branch
      %161 = sbr.rel (%p158) target = $region32
    $region31: #{mha_split.4} parent=5 // pred_region
      %s162 = ssub.s32 %s9, 1
      %p163 = scmp.lt.s32.totalorder %s14, 1
      %s164 = scalar_select %p163, %s14, 1
      %s165 = smul.addr %s164, 8
      %s166 = smul.addr %s165, 4
      %s167 = scalar_lea.vmem %s0, %s166
      %p168 = pneg %p35
      %p169 = pneg %p32
      %p170 = scmp.lt.s32.totalorder %s14, 1
      %s171 = scalar_select %p170, %s14, 1
      %s172 = smul.addr %s171, 8
      %s173 = smul.addr %s172, 4
      %s174 = scalar_lea.vmem %s1, %s173
      %p175 = pneg %p61
      %p176 = pneg %p58
      %p177 = scmp.lt.s32.totalorder %s14, 1
      %s178 = scalar_select %p177, %s14, 1
      %s179 = smul.addr %s178, 8
      %s180 = smul.addr %s179, 4
      %s181 = scalar_lea.vmem %s2, %s180
      %p182 = pneg %p87
      %p183 = pneg %p84
      %p184 = pneg %p113
      %p185 = pneg %p110
      %p186 = scmp.lt.s32.totalorder %s14, 1
      %s187 = scalar_select %p186, %s14, 1
      %s188 = smul.addr %s187, 8
      %s189 = smul.addr %s188, 4
      %s190 = scalar_lea.vmem %s3, %s189
      %p191 = scmp.lt.s32.totalorder %s14, 1
      %s192 = scalar_select %p191, %s14, 1
      %s193 = smul.addr %s192, 8
      %s194 = smul.addr %s193, 4
      %s195 = scalar_lea.vmem %s0, %s194
      %p196 = scmp.lt.s32.totalorder %s14, 1
      %s197 = scalar_select %p196, %s14, 1
      %s198 = smul.addr %s197, 8
      %s199 = smul.addr %s198, 4
      %s200 = scalar_lea.vmem %s1, %s199
      %p201 = scmp.lt.s32.totalorder %s14, 1
      %s202 = scalar_select %p201, %s14, 1
      %s203 = smul.addr %s202, 8
      %s204 = smul.addr %s203, 4
      %s205 = scalar_lea.vmem %s2, %s204
      %p206 = scmp.lt.s32.totalorder %s14, 1
      %s207 = scalar_select %p206, %s14, 1
      %s208 = smul.addr %s207, 8
      %s209 = smul.addr %s208, 4
      %s210 = scalar_lea.vmem %s3, %s209
      %v212 = vld [vmem:[%s195] sm:$0xf]
      %v213 = vld [vmem:[%s195 + $0x4] sm:$0xf]
      %v214 = vld [vmem:[%s195 + $0x8] sm:$0xf]
      %v215 = vld [vmem:[%s195 + $0xc] sm:$0xf]
      %v216 = vld [vmem:[%s195 + $0x10] sm:$0xf]
      %v217 = vld [vmem:[%s195 + $0x14] sm:$0xf]
      %v218 = vld [vmem:[%s195 + $0x18] sm:$0xf]
      %v219 = vld [vmem:[%s195 + $0x1c] sm:$0xf]
      %v220 = vld [vmem:[%s200] sm:$0xf]
      %v221 = vld [vmem:[%s200 + $0x4] sm:$0xf]
      %v222 = vld [vmem:[%s200 + $0x8] sm:$0xf]
      %v223 = vld [vmem:[%s200 + $0xc] sm:$0xf]
      %v224 = vld [vmem:[%s200 + $0x10] sm:$0xf]
      %v225 = vld [vmem:[%s200 + $0x14] sm:$0xf]
      %v226 = vld [vmem:[%s200 + $0x18] sm:$0xf]
      %v227 = vld [vmem:[%s200 + $0x1c] sm:$0xf]
      %v228 = vld [vmem:[%s205] sm:$0xf]
      %v229 = vld [vmem:[%s205 + $0x4] sm:$0xf]
      %v230 = vld [vmem:[%s205 + $0x8] sm:$0xf]
      %v231 = vld [vmem:[%s205 + $0xc] sm:$0xf]
      %v232 = vld [vmem:[%s205 + $0x10] sm:$0xf]
      %v233 = vld [vmem:[%s205 + $0x14] sm:$0xf]
      %v234 = vld [vmem:[%s205 + $0x18] sm:$0xf]
      %v235 = vld [vmem:[%s205 + $0x1c] sm:$0xf]
      %v238 = vunpack.c.l.b16 %v212
      %v239 = vunpack.c.l.b16 %v213
      %v240 = vpack.c.b16 %v239, %v238
      %v243 = vunpack.c.l.b16 %v220
      %v244 = vunpack.c.l.b16 %v221
      %v245 = vpack.c.b16 %v244, %v243
      %vm246 = vcmask 64512
      %v248 = vsel %vm246, %v240, 0
      %v251 = vsel %vm246, %v245, 0
      %253 = vmatprep.subr.bf16.mxu0 0
      %254 = vmatpush1.bf16.xpose.msra.mxu0 %v251
      %255 = vmatprep.subr.bf16.mxu0 0
      %256 = vmatpush1.bf16.xpose.msra.mxu0 0
      %257 = vmatprep.subr.bf16.mxu0 0
      %258 = vmatpush1.bf16.xpose.msra.mxu0 0
      %259 = vmatprep.subr.bf16.mxu0 0
      %260 = vmatpush1.bf16.xpose.msra.mxu0 0
      %261 = vmatprep.subr.bf16.mxu0 0
      %262 = vmatpush1.bf16.xpose.msra.mxu0 0
      %263 = vmatprep.subr.bf16.mxu0 0
      %264 = vmatpush1.bf16.xpose.msra.mxu0 0
      %265 = vmatprep.subr.bf16.mxu0 0
      %266 = vmatpush1.bf16.xpose.msra.mxu0 0
      %267 = vmatprep.subr.bf16.mxu0 0
      %268 = vmatpush1.bf16.xpose.msra.mxu0 0
      %269 = vmatprep.subr.bf16.mxu0 0
      %270 = vmatpush1.bf16.xpose.msra.mxu0 0
      %271 = vmatprep.subr.bf16.mxu0 0
      %272 = vmatpush1.bf16.xpose.msra.mxu0 0
      %273 = vmatprep.subr.bf16.mxu0 0
      %274 = vmatpush1.bf16.xpose.msra.mxu0 0
      %275 = vmatprep.subr.bf16.mxu0 0
      %276 = vmatpush1.bf16.xpose.msra.mxu0 0
      %277 = vmatprep.subr.bf16.mxu0 0
      %278 = vmatpush1.bf16.xpose.msra.mxu0 0
      %279 = vmatprep.subr.bf16.mxu0 0
      %280 = vmatpush1.bf16.xpose.msra.mxu0 0
      %281 = vmatprep.subr.bf16.mxu0 0
      %282 = vmatpush1.bf16.xpose.msra.mxu0 0
      %283 = vmatprep.subr.bf16.mxu0 0
      %284 = vmatpush1.bf16.xpose.msra.mxu0 0
      %285 = vmatprep.mubr.bf16.mxu0 0
      %286 = vmatmul.mubr.bf16.gmra.mrb[0].mxu0 %v248
      %v287 = vpop.f32.mrb[0].mxu0
      %v288 = vadd.f32 0.0, %v287
      %v289 = vpop.f32.mrb[0].mxu0
      %v290 = vpop.f32.mrb[0].mxu0
      %v291 = vadd.f32 0.0, %v290
      %v292 = vpop.f32.mrb[0].mxu0
      %293 = vdwg.mxu0
      %v296 = vunpack.c.l.b16 %v214
      %v297 = vunpack.c.l.b16 %v215
      %v298 = vpack.c.b16 %v297, %v296
      %v301 = vunpack.c.l.b16 %v222
      %v302 = vunpack.c.l.b16 %v223
      %v303 = vpack.c.b16 %v302, %v301
      %v305 = vsel %vm246, %v298, 0
      %v308 = vsel %vm246, %v303, 0
      %310 = vmatprep.subr.bf16.mxu0 0
      %311 = vmatpush1.bf16.xpose.msra.mxu0 %v308
      %312 = vmatprep.subr.bf16.mxu0 0
      %313 = vmatpush1.bf16.xpose.msra.mxu0 0
      %314 = vmatprep.subr.bf16.mxu0 0
      %315 = vmatpush1.bf16.xpose.msra.mxu0 0
      %316 = vmatprep.subr.bf16.mxu0 0
      %317 = vmatpush1.bf16.xpose.msra.mxu0 0
      %318 = vmatprep.subr.bf16.mxu0 0
      %319 = vmatpush1.bf16.xpose.msra.mxu0 0
      %320 = vmatprep.subr.bf16.mxu0 0
      %321 = vmatpush1.bf16.xpose.msra.mxu0 0
      %322 = vmatprep.subr.bf16.mxu0 0
      %323 = vmatpush1.bf16.xpose.msra.mxu0 0
      %324 = vmatprep.subr.bf16.mxu0 0
      %325 = vmatpush1.bf16.xpose.msra.mxu0 0
      %326 = vmatprep.subr.bf16.mxu0 0
      %327 = vmatpush1.bf16.xpose.msra.mxu0 0
      %328 = vmatprep.subr.bf16.mxu0 0
      %329 = vmatpush1.bf16.xpose.msra.mxu0 0
      %330 = vmatprep.subr.bf16.mxu0 0
      %331 = vmatpush1.bf16.xpose.msra.mxu0 0
      %332 = vmatprep.subr.bf16.mxu0 0
      %333 = vmatpush1.bf16.xpose.msra.mxu0 0
      %334 = vmatprep.subr.bf16.mxu0 0
      %335 = vmatpush1.bf16.xpose.msra.mxu0 0
      %336 = vmatprep.subr.bf16.mxu0 0
      %337 = vmatpush1.bf16.xpose.msra.mxu0 0
      %338 = vmatprep.subr.bf16.mxu0 0
      %339 = vmatpush1.bf16.xpose.msra.mxu0 0
      %340 = vmatprep.subr.bf16.mxu0 0
      %341 = vmatpush1.bf16.xpose.msra.mxu0 0
      %342 = vmatprep.mubr.bf16.mxu0 0
      %343 = vmatmul.mubr.bf16.gmra.mrb[0].mxu0 %v305
      %v344 = vpop.f32.mrb[0].mxu0
      %v345 = vadd.f32 0.0, %v344
      %v346 = vpop.f32.mrb[0].mxu0
      %v347 = vpop.f32.mrb[0].mxu0
      %v348 = vadd.f32 0.0, %v347
      %v349 = vpop.f32.mrb[0].mxu0
      %350 = vdwg.mxu0
      %v353 = vunpack.c.l.b16 %v216
      %v354 = vunpack.c.l.b16 %v217
      %v355 = vpack.c.b16 %v354, %v353
      %v358 = vunpack.c.l.b16 %v224
      %v359 = vunpack.c.l.b16 %v225
      %v360 = vpack.c.b16 %v359, %v358
      %v362 = vsel %vm246, %v355, 0
      %v365 = vsel %vm246, %v360, 0
      %367 = vmatprep.subr.bf16.mxu0 0
      %368 = vmatpush1.bf16.xpose.msra.mxu0 %v365
      %369 = vmatprep.subr.bf16.mxu0 0
      %370 = vmatpush1.bf16.xpose.msra.mxu0 0
      %371 = vmatprep.subr.bf16.mxu0 0
      %372 = vmatpush1.bf16.xpose.msra.mxu0 0
      %373 = vmatprep.subr.bf16.mxu0 0
      %374 = vmatpush1.bf16.xpose.msra.mxu0 0
      %375 = vmatprep.subr.bf16.mxu0 0
      %376 = vmatpush1.bf16.xpose.msra.mxu0 0
      %377 = vmatprep.subr.bf16.mxu0 0
      %378 = vmatpush1.bf16.xpose.msra.mxu0 0
      %379 = vmatprep.subr.bf16.mxu0 0
      %380 = vmatpush1.bf16.xpose.msra.mxu0 0
      %381 = vmatprep.subr.bf16.mxu0 0
      %382 = vmatpush1.bf16.xpose.msra.mxu0 0
      %383 = vmatprep.subr.bf16.mxu0 0
      %384 = vmatpush1.bf16.xpose.msra.mxu0 0
      %385 = vmatprep.subr.bf16.mxu0 0
      %386 = vmatpush1.bf16.xpose.msra.mxu0 0
      %387 = vmatprep.subr.bf16.mxu0 0
      %388 = vmatpush1.bf16.xpose.msra.mxu0 0
      %389 = vmatprep.subr.bf16.mxu0 0
      %390 = vmatpush1.bf16.xpose.msra.mxu0 0
      %391 = vmatprep.subr.bf16.mxu0 0
      %392 = vmatpush1.bf16.xpose.msra.mxu0 0
      %393 = vmatprep.subr.bf16.mxu0 0
      %394 = vmatpush1.bf16.xpose.msra.mxu0 0
      %395 = vmatprep.subr.bf16.mxu0 0
      %396 = vmatpush1.bf16.xpose.msra.mxu0 0
      %397 = vmatprep.subr.bf16.mxu0 0
      %398 = vmatpush1.bf16.xpose.msra.mxu0 0
      %399 = vmatprep.mubr.bf16.mxu0 0
      %400 = vmatmul.mubr.bf16.gmra.mrb[0].mxu0 %v362
      %v401 = vpop.f32.mrb[0].mxu0
      %v402 = vadd.f32 0.0, %v401
      %v403 = vpop.f32.mrb[0].mxu0
      %v404 = vpop.f32.mrb[0].mxu0
      %v405 = vadd.f32 0.0, %v404
      %v406 = vpop.f32.mrb[0].mxu0
      %407 = vdwg.mxu0
      %v410 = vunpack.c.l.b16 %v218
      %v411 = vunpack.c.l.b16 %v219
      %v412 = vpack.c.b16 %v411, %v410
      %v415 = vunpack.c.l.b16 %v226
      %v416 = vunpack.c.l.b16 %v227
      %v417 = vpack.c.b16 %v416, %v415
      %v419 = vsel %vm246, %v412, 0
      %v422 = vsel %vm246, %v417, 0
      %424 = vmatprep.subr.bf16.mxu0 0
      %425 = vmatpush1.bf16.xpose.msra.mxu0 %v422
      %426 = vmatprep.subr.bf16.mxu0 0
      %427 = vmatpush1.bf16.xpose.msra.mxu0 0
      %428 = vmatprep.subr.bf16.mxu0 0
      %429 = vmatpush1.bf16.xpose.msra.mxu0 0
      %430 = vmatprep.subr.bf16.mxu0 0
      %431 = vmatpush1.bf16.xpose.msra.mxu0 0
      %432 = vmatprep.subr.bf16.mxu0 0
      %433 = vmatpush1.bf16.xpose.msra.mxu0 0
      %434 = vmatprep.subr.bf16.mxu0 0
      %435 = vmatpush1.bf16.xpose.msra.mxu0 0
      %436 = vmatprep.subr.bf16.mxu0 0
      %437 = vmatpush1.bf16.xpose.msra.mxu0 0
      %438 = vmatprep.subr.bf16.mxu0 0
      %439 = vmatpush1.bf16.xpose.msra.mxu0 0
      %440 = vmatprep.subr.bf16.mxu0 0
      %441 = vmatpush1.bf16.xpose.msra.mxu0 0
      %442 = vmatprep.subr.bf16.mxu0 0
      %443 = vmatpush1.bf16.xpose.msra.mxu0 0
      %444 = vmatprep.subr.bf16.mxu0 0
      %445 = vmatpush1.bf16.xpose.msra.mxu0 0
      %446 = vmatprep.subr.bf16.mxu0 0
      %447 = vmatpush1.bf16.xpose.msra.mxu0 0
      %448 = vmatprep.subr.bf16.mxu0 0
      %449 = vmatpush1.bf16.xpose.msra.mxu0 0
      %450 = vmatprep.subr.bf16.mxu0 0
      %451 = vmatpush1.bf16.xpose.msra.mxu0 0
      %452 = vmatprep.subr.bf16.mxu0 0
      %453 = vmatpush1.bf16.xpose.msra.mxu0 0
      %454 = vmatprep.subr.bf16.mxu0 0
      %455 = vmatpush1.bf16.xpose.msra.mxu0 0
      %456 = vmatprep.mubr.bf16.mxu0 0
      %457 = vmatmul.mubr.bf16.gmra.mrb[0].mxu0 %v419
      %v458 = vpop.f32.mrb[0].mxu0
      %v459 = vadd.f32 0.0, %v458
      %v460 = vpop.f32.mrb[0].mxu0
      %v461 = vpop.f32.mrb[0].mxu0
      %v462 = vadd.f32 0.0, %v461
      %v463 = vpop.f32.mrb[0].mxu0
      %464 = vdwg.mxu0
      %vm465 = vcmask 130048
      %v466 = vsel %vm465, %v288, -inf
      %467 = vmax.xlane.f32.xlu0 %v466
      %v468 = vpop.xlane.xlu0 %467
      %v469 = vsel %vm465, %v291, -inf
      %470 = vmax.xlane.f32.xlu0 %v469
      %v471 = vpop.xlane.xlu0 %470
      %v472 = vsel %vm465, %v345, -inf
      %473 = vmax.xlane.f32.xlu0 %v472
      %v474 = vpop.xlane.xlu0 %473
      %v475 = vsel %vm465, %v348, -inf
      %476 = vmax.xlane.f32.xlu0 %v475
      %v477 = vpop.xlane.xlu0 %476
      %v478 = vsel %vm465, %v402, -inf
      %479 = vmax.xlane.f32.xlu0 %v478
      %v480 = vpop.xlane.xlu0 %479
      %v481 = vsel %vm465, %v405, -inf
      %482 = vmax.xlane.f32.xlu0 %v481
      %v483 = vpop.xlane.xlu0 %482
      %v484 = vsel %vm465, %v459, -inf
      %485 = vmax.xlane.f32.xlu0 %v484
      %v486 = vpop.xlane.xlu0 %485
      %v487 = vsel %vm465, %v462, -inf
      %488 = vmax.xlane.f32.xlu0 %v487
      %v489 = vpop.xlane.xlu0 %488
      %v490 = vsub.f32 %v288, %v468
      %v491 = vsub.f32 %v291, %v471
      %v492 = vsub.f32 %v345, %v474
      %v493 = vsub.f32 %v348, %v477
      %v494 = vsub.f32 %v402, %v480
      %v495 = vsub.f32 %v405, %v483
      %v496 = vsub.f32 %v459, %v486
      %v497 = vsub.f32 %v462, %v489
      %v498 = vmul.f32 %v490, 1.442695
      %v499 = vpow.pop %v498
      %v500 = vmul.f32 %v491, 1.442695
      %v501 = vpow.pop %v500
      %v502 = vmul.f32 %v492, 1.442695
      %v503 = vpow.pop %v502
      %v504 = vmul.f32 %v493, 1.442695
      %v505 = vpow.pop %v504
      %v506 = vmul.f32 %v494, 1.442695
      %v507 = vpow.pop %v506
      %v508 = vmul.f32 %v495, 1.442695
      %v509 = vpow.pop %v508
      %v510 = vmul.f32 %v496, 1.442695
      %v511 = vpow.pop %v510
      %v512 = vmul.f32 %v497, 1.442695
      %v513 = vpow.pop %v512
      %v514 = vsel %vm465, %v499, 0.0
      %515 = vadd.xlane.f32.xlu0 %v514
      %v516 = vpop.xlane.xlu0 %515
      %v517 = vsel %vm465, %v501, 0.0
      %518 = vadd.xlane.f32.xlu0 %v517
      %v519 = vpop.xlane.xlu0 %518
      %v520 = vsel %vm465, %v503, 0.0
      %521 = vadd.xlane.f32.xlu0 %v520
      %v522 = vpop.xlane.xlu0 %521
      %v523 = vsel %vm465, %v505, 0.0
      %524 = vadd.xlane.f32.xlu0 %v523
      %v525 = vpop.xlane.xlu0 %524
      %v526 = vsel %vm465, %v507, 0.0
      %527 = vadd.xlane.f32.xlu0 %v526
      %v528 = vpop.xlane.xlu0 %527
      %v529 = vsel %vm465, %v509, 0.0
      %530 = vadd.xlane.f32.xlu0 %v529
      %v531 = vpop.xlane.xlu0 %530
      %v532 = vsel %vm465, %v511, 0.0
      %533 = vadd.xlane.f32.xlu0 %v532
      %v534 = vpop.xlane.xlu0 %533
      %v535 = vsel %vm465, %v513, 0.0
      %536 = vadd.xlane.f32.xlu0 %v535
      %v537 = vpop.xlane.xlu0 %536
      %v538 = vrcp.pop %v516
      %v539 = vrcp.pop %v519
      %v540 = vrcp.pop %v522
      %v541 = vrcp.pop %v525
      %v542 = vrcp.pop %v528
      %v543 = vrcp.pop %v531
      %v544 = vrcp.pop %v534
      %v545 = vrcp.pop %v537
      %v546 = vmul.f32 %v499, %v538
      %v547 = vmul.f32 %v501, %v539
      %v548 = vmul.f32 %v503, %v540
      %v549 = vmul.f32 %v505, %v541
      %v550 = vmul.f32 %v507, %v542
      %v551 = vmul.f32 %v509, %v543
      %v552 = vmul.f32 %v511, %v544
      %v553 = vmul.f32 %v513, %v545
      %v554 = vpack.c.bf16 %v547, %v546
      %v555 = vpack.c.bf16 %v549, %v548
      %v556 = vpack.c.bf16 %v551, %v550
      %v557 = vpack.c.bf16 %v553, %v552
      %v560 = vunpack.c.l.b16 %v228
      %v561 = vunpack.c.l.b16 %v229
      %v562 = vpack.c.b16 %v561, %v560
      %v565 = vsel %vm465, %v554, 0
      %567 = vmatprep.subr.bf16.mxu0 0
      %568 = vmatpush1.bf16.msra.mxu0 %v562
      %569 = vmatprep.subr.bf16.mxu0 0
      %570 = vmatpush1.bf16.msra.mxu0 0
      %571 = vmatprep.subr.bf16.mxu0 0
      %572 = vmatpush1.bf16.msra.mxu0 0
      %573 = vmatprep.subr.bf16.mxu0 0
      %574 = vmatpush1.bf16.msra.mxu0 0
      %575 = vmatprep.subr.bf16.mxu0 0
      %576 = vmatpush1.bf16.msra.mxu0 0
      %577 = vmatprep.subr.bf16.mxu0 0
      %578 = vmatpush1.bf16.msra.mxu0 0
      %579 = vmatprep.subr.bf16.mxu0 0
      %580 = vmatpush1.bf16.msra.mxu0 0
      %581 = vmatprep.subr.bf16.mxu0 0
      %582 = vmatpush1.bf16.msra.mxu0 0
      %583 = vmatprep.subr.bf16.mxu0 0
      %584 = vmatpush1.bf16.msra.mxu0 0
      %585 = vmatprep.subr.bf16.mxu0 0
      %586 = vmatpush1.bf16.msra.mxu0 0
      %587 = vmatprep.subr.bf16.mxu0 0
      %588 = vmatpush1.bf16.msra.mxu0 0
      %589 = vmatprep.subr.bf16.mxu0 0
      %590 = vmatpush1.bf16.msra.mxu0 0
      %591 = vmatprep.subr.bf16.mxu0 0
      %592 = vmatpush1.bf16.msra.mxu0 0
      %593 = vmatprep.subr.bf16.mxu0 0
      %594 = vmatpush1.bf16.msra.mxu0 0
      %595 = vmatprep.subr.bf16.mxu0 0
      %596 = vmatpush1.bf16.msra.mxu0 0
      %597 = vmatprep.subr.bf16.mxu0 0
      %598 = vmatpush1.bf16.msra.mxu0 0
      %599 = vmatprep.mubr.bf16.mxu0 0
      %600 = vmatmul.mubr.bf16.gmra.mrb[0].mxu0 %v565
      %v601 = vpop.f32.mrb[0].mxu0
      %v602 = vadd.f32 0.0, %v601
      %v603 = vpop.f32.mrb[0].mxu0
      %v604 = vpop.f32.mrb[0].mxu0
      %v605 = vadd.f32 0.0, %v604
      %v606 = vpop.f32.mrb[0].mxu0
      %607 = vdwg.mxu0
      %v610 = vunpack.c.l.b16 %v230
      %v611 = vunpack.c.l.b16 %v231
      %v612 = vpack.c.b16 %v611, %v610
      %v615 = vsel %vm465, %v555, 0
      %617 = vmatprep.subr.bf16.mxu0 0
      %618 = vmatpush1.bf16.msra.mxu0 %v612
      %619 = vmatprep.subr.bf16.mxu0 0
      %620 = vmatpush1.bf16.msra.mxu0 0
      %621 = vmatprep.subr.bf16.mxu0 0
      %622 = vmatpush1.bf16.msra.mxu0 0
      %623 = vmatprep.subr.bf16.mxu0 0
      %624 = vmatpush1.bf16.msra.mxu0 0
      %625 = vmatprep.subr.bf16.mxu0 0
      %626 = vmatpush1.bf16.msra.mxu0 0
      %627 = vmatprep.subr.bf16.mxu0 0
      %628 = vmatpush1.bf16.msra.mxu0 0
      %629 = vmatprep.subr.bf16.mxu0 0
      %630 = vmatpush1.bf16.msra.mxu0 0
      %631 = vmatprep.subr.bf16.mxu0 0
      %632 = vmatpush1.bf16.msra.mxu0 0
      %633 = vmatprep.subr.bf16.mxu0 0
      %634 = vmatpush1.bf16.msra.mxu0 0
      %635 = vmatprep.subr.bf16.mxu0 0
      %636 = vmatpush1.bf16.msra.mxu0 0
      %637 = vmatprep.subr.bf16.mxu0 0
      %638 = vmatpush1.bf16.msra.mxu0 0
      %639 = vmatprep.subr.bf16.mxu0 0
      %640 = vmatpush1.bf16.msra.mxu0 0
      %641 = vmatprep.subr.bf16.mxu0 0
      %642 = vmatpush1.bf16.msra.mxu0 0
      %643 = vmatprep.subr.bf16.mxu0 0
      %644 = vmatpush1.bf16.msra.mxu0 0
      %645 = vmatprep.subr.bf16.mxu0 0
      %646 = vmatpush1.bf16.msra.mxu0 0
      %647 = vmatprep.subr.bf16.mxu0 0
      %648 = vmatpush1.bf16.msra.mxu0 0
      %649 = vmatprep.mubr.bf16.mxu0 0
      %650 = vmatmul.mubr.bf16.gmra.mrb[0].mxu0 %v615
      %v651 = vpop.f32.mrb[0].mxu0
      %v652 = vadd.f32 0.0, %v651
      %v653 = vpop.f32.mrb[0].mxu0
      %v654 = vpop.f32.mrb[0].mxu0
      %v655 = vadd.f32 0.0, %v654
      %v656 = vpop.f32.mrb[0].mxu0
      %657 = vdwg.mxu0
      %v660 = vunpack.c.l.b16 %v232
      %v661 = vunpack.c.l.b16 %v233
      %v662 = vpack.c.b16 %v661, %v660
      %v665 = vsel %vm465, %v556, 0
      %667 = vmatprep.subr.bf16.mxu0 0
      %668 = vmatpush1.bf16.msra.mxu0 %v662
      %669 = vmatprep.subr.bf16.mxu0 0
      %670 = vmatpush1.bf16.msra.mxu0 0
      %671 = vmatprep.subr.bf16.mxu0 0
      %672 = vmatpush1.bf16.msra.mxu0 0
      %673 = vmatprep.subr.bf16.mxu0 0
      %674 = vmatpush1.bf16.msra.mxu0 0
      %675 = vmatprep.subr.bf16.mxu0 0
      %676 = vmatpush1.bf16.msra.mxu0 0
      %677 = vmatprep.subr.bf16.mxu0 0
      %678 = vmatpush1.bf16.msra.mxu0 0
      %679 = vmatprep.subr.bf16.mxu0 0
      %680 = vmatpush1.bf16.msra.mxu0 0
      %681 = vmatprep.subr.bf16.mxu0 0
      %682 = vmatpush1.bf16.msra.mxu0 0
      %683 = vmatprep.subr.bf16.mxu0 0
      %684 = vmatpush1.bf16.msra.mxu0 0
      %685 = vmatprep.subr.bf16.mxu0 0
      %686 = vmatpush1.bf16.msra.mxu0 0
      %687 = vmatprep.subr.bf16.mxu0 0
      %688 = vmatpush1.bf16.msra.mxu0 0
      %689 = vmatprep.subr.bf16.mxu0 0
      %690 = vmatpush1.bf16.msra.mxu0 0
      %691 = vmatprep.subr.bf16.mxu0 0
      %692 = vmatpush1.bf16.msra.mxu0 0
      %693 = vmatprep.subr.bf16.mxu0 0
      %694 = vmatpush1.bf16.msra.mxu0 0
      %695 = vmatprep.subr.bf16.mxu0 0
      %696 = vmatpush1.bf16.msra.mxu0 0
      %697 = vmatprep.subr.bf16.mxu0 0
      %698 = vmatpush1.bf16.msra.mxu0 0
      %699 = vmatprep.mubr.bf16.mxu0 0
      %700 = vmatmul.mubr.bf16.gmra.mrb[0].mxu0 %v665
      %v701 = vpop.f32.mrb[0].mxu0
      %v702 = vadd.f32 0.0, %v701
      %v703 = vpop.f32.mrb[0].mxu0
      %v704 = vpop.f32.mrb[0].mxu0
      %v705 = vadd.f32 0.0, %v704
      %v706 = vpop.f32.mrb[0].mxu0
      %707 = vdwg.mxu0
      %v710 = vunpack.c.l.b16 %v234
      %v711 = vunpack.c.l.b16 %v235
      %v712 = vpack.c.b16 %v711, %v710
      %v715 = vsel %vm465, %v557, 0
      %717 = vmatprep.subr.bf16.mxu0 0
      %718 = vmatpush1.bf16.msra.mxu0 %v712
      %719 = vmatprep.subr.bf16.mxu0 0
      %720 = vmatpush1.bf16.msra.mxu0 0
      %721 = vmatprep.subr.bf16.mxu0 0
      %722 = vmatpush1.bf16.msra.mxu0 0
      %723 = vmatprep.subr.bf16.mxu0 0
      %724 = vmatpush1.bf16.msra.mxu0 0
      %725 = vmatprep.subr.bf16.mxu0 0
      %726 = vmatpush1.bf16.msra.mxu0 0
      %727 = vmatprep.subr.bf16.mxu0 0
      %728 = vmatpush1.bf16.msra.mxu0 0
      %729 = vmatprep.subr.bf16.mxu0 0
      %730 = vmatpush1.bf16.msra.mxu0 0
      %731 = vmatprep.subr.bf16.mxu0 0
      %732 = vmatpush1.bf16.msra.mxu0 0
      %733 = vmatprep.subr.bf16.mxu0 0
      %734 = vmatpush1.bf16.msra.mxu0 0
      %735 = vmatprep.subr.bf16.mxu0 0
      %736 = vmatpush1.bf16.msra.mxu0 0
      %737 = vmatprep.subr.bf16.mxu0 0
      %738 = vmatpush1.bf16.msra.mxu0 0
      %739 = vmatprep.subr.bf16.mxu0 0
      %740 = vmatpush1.bf16.msra.mxu0 0
      %741 = vmatprep.subr.bf16.mxu0 0
      %742 = vmatpush1.bf16.msra.mxu0 0
      %743 = vmatprep.subr.bf16.mxu0 0
      %744 = vmatpush1.bf16.msra.mxu0 0
      %745 = vmatprep.subr.bf16.mxu0 0
      %746 = vmatpush1.bf16.msra.mxu0 0
      %747 = vmatprep.subr.bf16.mxu0 0
      %748 = vmatpush1.bf16.msra.mxu0 0
      %749 = vmatprep.mubr.bf16.mxu0 0
      %750 = vmatmul.mubr.bf16.gmra.mrb[0].mxu0 %v715
      %v751 = vpop.f32.mrb[0].mxu0
      %v752 = vadd.f32 0.0, %v751
      %v753 = vpop.f32.mrb[0].mxu0
      %v754 = vpop.f32.mrb[0].mxu0
      %v755 = vadd.f32 0.0, %v754
      %v756 = vpop.f32.mrb[0].mxu0
      %757 = vdwg.mxu0
      %v758 = vpack.c.bf16 %v605, %v602
      %v759 = vpack.c.bf16 %v655, %v652
      %v760 = vpack.c.bf16 %v705, %v702
      %v761 = vpack.c.bf16 %v755, %v752
      %v766 = vunpack.c.l.b16 %v758
      %v767 = vunpack.c.h.b16 %v758
      %v768 = vunpack.c.l.b16 %v759
      %v769 = vunpack.c.h.b16 %v759
      %v770 = vunpack.c.l.b16 %v760
      %v771 = vunpack.c.h.b16 %v760
      %v772 = vunpack.c.l.b16 %v761
      %v773 = vunpack.c.h.b16 %v761
      %v774 = vpack.c.b16 %v766, %v766
      %v775 = vpack.c.b16 %v767, %v767
      %v776 = vpack.c.b16 %v768, %v768
      %v777 = vpack.c.b16 %v769, %v769
      %v778 = vpack.c.b16 %v770, %v770
      %v779 = vpack.c.b16 %v771, %v771
      %v780 = vpack.c.b16 %v772, %v772
      %v781 = vpack.c.b16 %v773, %v773
      %vm790 = vcmask 60416
      %791 = vst.msk [vmem:[%s210] sm:$0xf] %vm790, %v774
      %792 = vst.msk [vmem:[%s210 + $0x4] sm:$0xf] %vm790, %v775
      %793 = vst.msk [vmem:[%s210 + $0x8] sm:$0xf] %vm790, %v776
      %794 = vst.msk [vmem:[%s210 + $0xc] sm:$0xf] %vm790, %v777
      %795 = vst.msk [vmem:[%s210 + $0x10] sm:$0xf] %vm790, %v778
      %796 = vst.msk [vmem:[%s210 + $0x14] sm:$0xf] %vm790, %v779
      %797 = vst.msk [vmem:[%s210 + $0x18] sm:$0xf] %vm790, %v780
      %798 = vst.msk [vmem:[%s210 + $0x1c] sm:$0xf] %vm790, %v781
      %p799 = scmp.lt.s32.totalorder %s14, 1
      %s800 = scalar_select %p799, %s14, 1
      %s801 = smul.addr %s800, 8
      %s802 = smul.addr %s801, 4
      %s803 = scalar_lea.vmem %s3, %s802
      // Predicated region
      $region33: #{mha_split.4} parent=31 // pred_check
        %p804 = pneg %p110
      $region34: #{mha_split.4} parent=31 // pred_check_branch
        %806 = sbr.rel (%p804) target = $region36
      $region35: #{mha_split.4} parent=31 // pred_region
        _
      $region36: #{mha_split.4} parent=31 // pred_fallthru
        _
    $region32: #{mha_split.4} parent=5 // pred_fallthru
      _
    %p807 = scmp.le.s32.totalorder 2, %s9
    // Predicated region
    $region37: #{mha_split.4} parent=5 // pred_check
      %p808 = pneg %p807
    $region38: #{mha_split.4} parent=5 // pred_check_branch
      %810 = sbr.rel (%p808) target = $region40
    $region39: #{mha_split.4} parent=5 // pred_region
      %s811 = ssub.s32 %s9, 2
      // Predicated region
      $region41: #{mha_split.4} parent=39 // pred_check
        %p812 = pneg %p116
      $region42: #{mha_split.4} parent=39 // pred_check_branch
        %814 = sbr.rel (%p812) target = $region44
      $region43: #{mha_split.4} parent=39 // pred_region
        %p815 = scmp.lt.s32.totalorder %s15, 1
        %s816 = scalar_select %p815, %s15, 1
        %s817 = smul.addr %s816, 8
        %s818 = smul.addr %s817, 4
        %s819 = scalar_lea.vmem %s3, %s818
      $region44: #{mha_split.4} parent=39 // pred_fallthru
        _
    $region40: #{mha_split.4} parent=5 // pred_fallthru
      _
  $region6: #{mha_split.4} parent=0 // loop_footer
    %s13 = sadd.s32 1, %s9
  $region7: #{mha_split.4} parent=0 // loop_footer_branch
    %8 = sbr.rel target = $region3
  $region8: #{mha_split.4} parent=0 // loop_exit
    _

</llo_original>
